<compile_context>
chip_gen: v5e
topology: v5e:2x2
jax: 0.10.0
libtpu: 0.0.40
codegen_flags: <defaults>
</compile_context>

<pallas_src>
import jax
import jax.numpy as jnp
import numpy as np
from jax import lax
from jax.experimental import pallas as pl
from jax.experimental.pallas import tpu as pltpu

_BN_EPS = 1e-5
_F_PAD = 128            # lane-dense width used for every layer's channel axis


def _make_kernel(B, N, tile_n, c_in, n_tiles):
    """Build the (phase, tile) kernel with static shape info baked in."""
    M = B * tile_n
    inv_cnt = 1.0 / float(B * N)            # BN uses the TRUE (unpadded) count
    need_mask = (n_tiles * tile_n) != N     # point axis was zero-padded

    def kernel(x_ref, w1_ref, w2_ref, w3_ref, gb_ref, out_ref,
               stats_ref, aff_ref):
        phase = pl.program_id(0)            # 0..2: stats of layer k ; 3: apply+max
        tile = pl.program_id(1)
        last = pl.num_programs(1) - 1

        @pl.when((phase == 0) & (tile == 0))
        def _init_stats():
            stats_ref[...] = jnp.zeros_like(stats_ref)

        @pl.when((phase == 3) & (tile == 0))
        def _init_out():
            out_ref[...] = jnp.zeros_like(out_ref)   # ReLU output => true max >= 0

        x = x_ref[...].astype(jnp.float32)           # (B, tile_n, C_in)
        h0 = x.reshape(M, c_in)                      # one big sublane-major matmul dim

        if need_mask:
            n_in_tile = lax.broadcasted_iota(jnp.int32, (M, 1), 0) % tile_n
            maskf = ((tile * tile_n + n_in_tile) < N).astype(jnp.float32)
        else:
            maskf = None

        def conv1(h):
            # K = C_in is tiny: VPU broadcast multiply-accumulates instead of an
            # underfilled MXU contraction.  (Conv bias cancels under training BN.)
            if c_in > 8:
                return jnp.dot(h, w1_ref[...], preferred_element_type=jnp.float32)
            y = h[:, 0:1] * w1_ref[0:1, :]
            for c in range(1, c_in):
                y = y + h[:, c:c + 1] * w1_ref[c:c + 1, :]
            return y                                  # (M, 128) f32

        def convk(z, w_ref):
            # MXU matmul; operands may be bf16 (f32 accumulation), no bias.
            return jnp.dot(z.astype(w_ref.dtype), w_ref[...],
                           preferred_element_type=jnp.float32)

        def bn_relu(y, k):
            # Fused per-channel FMA: BN + gamma/beta -> one mul-add.
            s = aff_ref[2 * k:2 * k + 1, :]
            t = aff_ref[2 * k + 1:2 * k + 2, :]
            return jnp.maximum(y * s + t, 0.0)

        def accum_stats(y, k):
            if maskf is not None:
                y = y * maskf                         # padded rows contribute 0
            stats_ref[2 * k:2 * k + 1, :] += jnp.sum(y, axis=0, keepdims=True)
            stats_ref[2 * k + 1:2 * k + 2, :] += jnp.sum(y * y, axis=0, keepdims=True)

        def finalize(k):
            # One-pass stats -> per-channel scale/shift.  The conv bias cancels
            # exactly under training-mode BN, so it never appears here.
            ssum = stats_ref[2 * k:2 * k + 1, :]
            ssq = stats_ref[2 * k + 1:2 * k + 2, :]
            mean_xw = ssum * inv_cnt
            var = jnp.maximum(ssq * inv_cnt - mean_xw * mean_xw, 0.0)
            g = gb_ref[2 * k:2 * k + 1, :]
            be = gb_ref[2 * k + 1:2 * k + 2, :]
            scale = g * lax.rsqrt(var + _BN_EPS)      # EUP slot, ~free
            shift = be - mean_xw * scale
            aff_ref[2 * k:2 * k + 1, :] = scale
            aff_ref[2 * k + 1:2 * k + 2, :] = shift

        @pl.when(phase == 0)
        def _p0():
            accum_stats(conv1(h0), 0)
            @pl.when(tile == last)
            def _():
                finalize(0)

        @pl.when(phase == 1)
        def _p1():
            z1 = bn_relu(conv1(h0), 0)
            accum_stats(convk(z1, w2_ref), 1)
            @pl.when(tile == last)
            def _():
                finalize(1)

        @pl.when(phase == 2)
        def _p2():
            z1 = bn_relu(conv1(h0), 0)
            z2 = bn_relu(convk(z1, w2_ref), 1)
            accum_stats(convk(z2, w3_ref), 2)
            @pl.when(tile == last)
            def _():
                finalize(2)

        @pl.when(phase == 3)
        def _p3():
            z1 = bn_relu(conv1(h0), 0)
            z2 = bn_relu(convk(z1, w2_ref), 1)
            z3 = bn_relu(convk(z2, w3_ref), 2)
            if maskf is not None:
                z3 = z3 * maskf                       # safe: ReLU => per-batch max >= 0
            tile_max = jnp.max(z3.reshape(B, tile_n, _F_PAD), axis=1)   # (B, 128)
            out_ref[...] = jnp.maximum(out_ref[...], tile_max)

    return kernel


def _pad_to(a, shape):
    return jnp.pad(a, [(0, s - d) for d, s in zip(a.shape, shape)])


def encoder_forward(x_ncw, params, *, tile_n=None, use_bf16=True):
    """x_ncw: (B, C_in, N) float32 (PyTorch NCW).  Returns (B, n_filters[2])."""
    (w1, b1, g1, be1), (w2, b2, g2, be2), (w3, b3, g3, be3) = params
    del b1, b2, b3   # Conv1d bias cancels exactly under training-mode BatchNorm
    B, c_in, N = x_ncw.shape
    f3 = w3.shape[1]
    assert max(c_in, w1.shape[1], w2.shape[1], f3) <= _F_PAD

    # --- point-axis tiling ---------------------------------------------------
    if tile_n is None:
        # ~1K rows (B * tile_n) per grid step: amortises per-step overhead while
        # staying comfortably inside v7x's 64 MiB VMEM and v5e's HBM bandwidth.
        tile_n = min(max(1024 // max(B, 1), 8), N)
    tile_n = max(8, ((tile_n + 7) // 8) * 8)
    n_tiles = -(-N // tile_n)
    n_pad = n_tiles * tile_n

    # --- kernel-friendly layouts ---------------------------------------------
    x_bnc = jnp.transpose(x_ncw, (0, 2, 1)).astype(jnp.float32)    # (B, N, C_in)
    if n_pad != N:
        x_bnc = jnp.pad(x_bnc, ((0, 0), (0, n_pad - N), (0, 0)))

    mm_dtype = jnp.bfloat16 if use_bf16 else jnp.float32
    w1p = _pad_to(w1.astype(jnp.float32), (c_in, _F_PAD))          # VPU layer: keep f32
    w2p = _pad_to(w2, (_F_PAD, _F_PAD)).astype(mm_dtype)           # MXU layers
    w3p = _pad_to(w3, (_F_PAD, _F_PAD)).astype(mm_dtype)

    def vec(v):
        return _pad_to(v.reshape(1, -1).astype(jnp.float32), (1, _F_PAD))
    # rows: [g1, be1, g2, be2, g3, be3]; zero-padded gammas keep the padded
    # channels exactly zero through every layer.
    gb = jnp.concatenate([vec(g1), vec(be1),
                          vec(g2), vec(be2),
                          vec(g3), vec(be3)], axis=0)               # (6, 128)

    kernel = _make_kernel(B, N, tile_n, c_in, n_tiles)
    const = lambda p, t: (0, 0)

    out = pl.pallas_call(
        kernel,
        out_shape=jax.ShapeDtypeStruct((B, _F_PAD), jnp.float32),
        grid_spec=pltpu.PrefetchScalarGridSpec(
            num_scalar_prefetch=0,
            grid=(4, n_tiles),                # (phase, point-tile)
            in_specs=[
                pl.BlockSpec((B, tile_n, c_in), lambda p, t: (0, t, 0)),
                pl.BlockSpec((c_in, _F_PAD), const),
                pl.BlockSpec((_F_PAD, _F_PAD), const),
                pl.BlockSpec((_F_PAD, _F_PAD), const),
                pl.BlockSpec((6, _F_PAD), const),
            ],
            out_specs=pl.BlockSpec((B, _F_PAD), const),             # resident accumulator
            scratch_shapes=[
                pltpu.VMEM((6, _F_PAD), jnp.float32),   # per-layer sum / sumsq
                pltpu.VMEM((6, _F_PAD), jnp.float32),   # per-layer scale / shift
            ],
        ),
        compiler_params=pltpu.CompilerParams(
            # Both axes carry state (stats / max accumulators) -> arbitrary.
            # TODO(synk): on v7x, shard the tile axis across both TensorCores and
            # combine the tiny per-channel stats across cores.
            dimension_semantics=("arbitrary", "arbitrary"),
            vmem_limit_bytes=32 * 1024 * 1024,
        ),
    )(x_bnc, w1p, w2p, w3p, gb)
    return out[:, :f3]


def init_params(key, input_size, n_filters):
    """Deterministic params matching nn.Conv1d / nn.BatchNorm1d shapes."""
    assert len(n_filters) == 3
    params = []
    c_in = input_size
    for c_out in n_filters:
        key, kw, kb = jax.random.split(key, 3)
        bound = 1.0 / np.sqrt(c_in)
        w = jax.random.uniform(kw, (c_in, c_out), jnp.float32, -bound, bound)
        b = jax.random.uniform(kb, (1, c_out), jnp.float32, -bound, bound)
        gamma = jnp.ones((1, c_out), jnp.float32)     # BatchNorm default weight
        beta = jnp.zeros((1, c_out), jnp.float32)     # BatchNorm default bias
        params.append((w, b, gamma, beta))
        c_in = c_out
    return params


def _reference(x_ncw, params):
    """Pure-JAX reference of the PyTorch forward (training-mode BN), full f32."""
    h = jnp.transpose(x_ncw, (0, 2, 1)).astype(jnp.float32)
    for (w, b, g, be) in params:
        y = jnp.einsum("bnc,cf->bnf", h, w,
                       precision=jax.lax.Precision.HIGHEST) + b.reshape(1, 1, -1)
        mean = jnp.mean(y, axis=(0, 1), keepdims=True)
        var = jnp.mean((y - mean) ** 2, axis=(0, 1), keepdims=True)
        y = (y - mean) / jnp.sqrt(var + _BN_EPS)
        h = jnp.maximum(y * g.reshape(1, 1, -1) + be.reshape(1, 1, -1), 0.0)
    return jnp.max(h, axis=1)


if __name__ == "__main__":
    key = jax.random.PRNGKey(0)
    k_x, k_p = jax.random.split(key)

    B, C_IN, N_PTS = 2, 4, 16
    N_FILTERS = [16, 32, 64]

    x = jax.random.normal(k_x, (B, C_IN, N_PTS), jnp.float32)     # PyTorch NCW
    params = init_params(k_p, C_IN, N_FILTERS)

    ref = jax.block_until_ready(_reference(x, params))

    # f32 kernel path against the HIGHEST-precision f32 reference.  Tolerance
    # leaves headroom for MXU f32 pass behaviour while still catching any real
    # logic error (those show up at >= 1e-1 absolute).
    out_f32 = jax.block_until_ready(encoder_forward(x, params, use_bf16=False))
    np.testing.assert_allclose(np.asarray(out_f32), np.asarray(ref),
                               rtol=1e-2, atol=1e-2)

    # Default fast path: bf16 MXU operands (f32 accumulation / BN stats).
    out = jax.block_until_ready(encoder_forward(x, params))
    assert out.shape == (B, N_FILTERS[2])
    np.testing.assert_allclose(np.asarray(out), np.asarray(ref),
                               rtol=5e-2, atol=8e-2)
    print("KERNEL_OK")
</pallas_src>

<mosaic_0001>
module attributes {stable_mosaic.version = 11 : i64} {
  func.func @kernel(%arg0: i32, %arg1: i32, %arg2: memref<2x16x4xf32, #tpu.memory_space<vmem>>, %arg3: memref<4x128xf32, #tpu.memory_space<vmem>>, %arg4: memref<128x128xf32, #tpu.memory_space<vmem>>, %arg5: memref<128x128xf32, #tpu.memory_space<vmem>>, %arg6: memref<6x128xf32, #tpu.memory_space<vmem>>, %arg7: memref<2x128xf32, #tpu.memory_space<vmem>>, %arg8: memref<6x128xf32, #tpu.memory_space<vmem>>, %arg9: memref<6x128xf32, #tpu.memory_space<vmem>>) attributes {dimension_semantics = [#tpu.dimension_semantics<arbitrary>, #tpu.dimension_semantics<arbitrary>], iteration_bounds = array<i64: 4, 1>, scalar_prefetch = 0 : i64, scratch_operands = 2 : i64, tpu.core_type = #tpu.core_type<tc>, window_params = [{transform_indices = @transform_0, window_bounds = array<i64: 2, 16, 4>}, {pipeline_mode = #tpu.pipeline_mode<synchronous>, transform_indices = @transform_1, window_bounds = array<i64: 4, 128>}, {pipeline_mode = #tpu.pipeline_mode<synchronous>, transform_indices = @transform_2, window_bounds = array<i64: 128, 128>}, {pipeline_mode = #tpu.pipeline_mode<synchronous>, transform_indices = @transform_3, window_bounds = array<i64: 128, 128>}, {pipeline_mode = #tpu.pipeline_mode<synchronous>, transform_indices = @transform_4, window_bounds = array<i64: 6, 128>}, {pipeline_mode = #tpu.pipeline_mode<synchronous>, transform_indices = @transform_5, window_bounds = array<i64: 2, 128>}]} {
    %c0_i32 = arith.constant 0 : i32
    %0 = arith.cmpi eq, %arg0, %c0_i32 : i32
    %c0_i32_0 = arith.constant 0 : i32
    %1 = arith.cmpi eq, %arg1, %c0_i32_0 : i32
    %2 = arith.andi %0, %1 : i1
    %3 = arith.extui %2 : i1 to i32
    %c0_i32_1 = arith.constant 0 : i32
    %4 = arith.cmpi ne, %3, %c0_i32_1 : i32
    scf.if %4 {
      %cst = arith.constant 0.000000e+00 : f32
      %24 = vector.broadcast %cst : f32 to vector<6x128xf32>
      %c0_12 = arith.constant 0 : index
      %c0_13 = arith.constant 0 : index
      %25 = vector.load %arg8[%c0_12, %c0_13] : memref<6x128xf32, #tpu.memory_space<vmem>>, vector<6x128xf32>
      tpu.vector_store %arg8[%c0_12, %c0_13], %24 {strides = array<i32>} : memref<6x128xf32, #tpu.memory_space<vmem>>, vector<6x128xf32>,
    } else {
    }
    %c3_i32 = arith.constant 3 : i32
    %5 = arith.cmpi eq, %arg0, %c3_i32 : i32
    %c0_i32_2 = arith.constant 0 : i32
    %6 = arith.cmpi eq, %arg1, %c0_i32_2 : i32
    %7 = arith.andi %5, %6 : i1
    %8 = arith.extui %7 : i1 to i32
    %c0_i32_3 = arith.constant 0 : i32
    %9 = arith.cmpi ne, %8, %c0_i32_3 : i32
    scf.if %9 {
      %cst = arith.constant 0.000000e+00 : f32
      %24 = vector.broadcast %cst : f32 to vector<2x128xf32>
      %c0_12 = arith.constant 0 : index
      %c0_13 = arith.constant 0 : index
      %25 = vector.load %arg7[%c0_12, %c0_13] : memref<2x128xf32, #tpu.memory_space<vmem>>, vector<2x128xf32>
      tpu.vector_store %arg7[%c0_12, %c0_13], %24 {strides = array<i32>} : memref<2x128xf32, #tpu.memory_space<vmem>>, vector<2x128xf32>,
    } else {
    }
    %c0 = arith.constant 0 : index
    %c0_4 = arith.constant 0 : index
    %c0_5 = arith.constant 0 : index
    %10 = vector.load %arg2[%c0, %c0_4, %c0_5] : memref<2x16x4xf32, #tpu.memory_space<vmem>>, vector<2x16x4xf32>
    %11 = vector.shape_cast %10 : vector<2x16x4xf32> to vector<32x4xf32>
    %c0_i32_6 = arith.constant 0 : i32
    %12 = arith.cmpi eq, %arg0, %c0_i32_6 : i32
    %13 = arith.extui %12 : i1 to i32
    %c0_i32_7 = arith.constant 0 : i32
    %14 = arith.cmpi ne, %13, %c0_i32_7 : i32
    scf.if %14 {
      %24 = vector.extract_strided_slice %11 {offsets = [0, 0], sizes = [32, 1], strides = [1, 1]} : vector<32x4xf32> to vector<32x1xf32>
      %c0_12 = arith.constant 0 : index
      %c0_13 = arith.constant 0 : index
      %25 = vector.load %arg3[%c0_12, %c0_13] : memref<4x128xf32, #tpu.memory_space<vmem>>, vector<1x128xf32>
      %26 = vector.broadcast %24 : vector<32x1xf32> to vector<32x128xf32>
      %27 = vector.broadcast %25 : vector<1x128xf32> to vector<32x128xf32>
      %28 = arith.mulf %26, %27 : vector<32x128xf32>
      %29 = vector.extract_strided_slice %11 {offsets = [0, 1], sizes = [32, 1], strides = [1, 1]} : vector<32x4xf32> to vector<32x1xf32>
      %c1 = arith.constant 1 : index
      %c0_14 = arith.constant 0 : index
      %30 = vector.load %arg3[%c1, %c0_14] : memref<4x128xf32, #tpu.memory_space<vmem>>, vector<1x128xf32>
      %31 = vector.broadcast %29 : vector<32x1xf32> to vector<32x128xf32>
      %32 = vector.broadcast %30 : vector<1x128xf32> to vector<32x128xf32>
      %33 = arith.mulf %31, %32 : vector<32x128xf32>
      %34 = arith.addf %28, %33 : vector<32x128xf32>
      %35 = vector.extract_strided_slice %11 {offsets = [0, 2], sizes = [32, 1], strides = [1, 1]} : vector<32x4xf32> to vector<32x1xf32>
      %c2 = arith.constant 2 : index
      %c0_15 = arith.constant 0 : index
      %36 = vector.load %arg3[%c2, %c0_15] : memref<4x128xf32, #tpu.memory_space<vmem>>, vector<1x128xf32>
      %37 = vector.broadcast %35 : vector<32x1xf32> to vector<32x128xf32>
      %38 = vector.broadcast %36 : vector<1x128xf32> to vector<32x128xf32>
      %39 = arith.mulf %37, %38 : vector<32x128xf32>
      %40 = arith.addf %34, %39 : vector<32x128xf32>
      %41 = vector.extract_strided_slice %11 {offsets = [0, 3], sizes = [32, 1], strides = [1, 1]} : vector<32x4xf32> to vector<32x1xf32>
      %c3 = arith.constant 3 : index
      %c0_16 = arith.constant 0 : index
      %42 = vector.load %arg3[%c3, %c0_16] : memref<4x128xf32, #tpu.memory_space<vmem>>, vector<1x128xf32>
      %43 = vector.broadcast %41 : vector<32x1xf32> to vector<32x128xf32>
      %44 = vector.broadcast %42 : vector<1x128xf32> to vector<32x128xf32>
      %45 = arith.mulf %43, %44 : vector<32x128xf32>
      %46 = arith.addf %40, %45 : vector<32x128xf32>
      %c0_17 = arith.constant 0 : index
      %c0_18 = arith.constant 0 : index
      %47 = vector.load %arg8[%c0_17, %c0_18] : memref<6x128xf32, #tpu.memory_space<vmem>>, vector<1x128xf32>
      %cst = arith.constant dense<0.000000e+00> : vector<128xf32>
      %48 = vector.multi_reduction <add>, %46, %cst [0] : vector<32x128xf32> to vector<128xf32>
      %49 = vector.shape_cast %48 : vector<128xf32> to vector<1x128xf32>
      %50 = arith.addf %47, %49 : vector<1x128xf32>
      %c0_19 = arith.constant 0 : index
      %c0_20 = arith.constant 0 : index
      %51 = vector.load %arg8[%c0_19, %c0_20] : memref<6x128xf32, #tpu.memory_space<vmem>>, vector<1x128xf32>
      tpu.vector_store %arg8[%c0_19, %c0_20], %50 {strides = array<i32>} : memref<6x128xf32, #tpu.memory_space<vmem>>, vector<1x128xf32>,
      %c1_21 = arith.constant 1 : index
      %c0_22 = arith.constant 0 : index
      %52 = vector.load %arg8[%c1_21, %c0_22] : memref<6x128xf32, #tpu.memory_space<vmem>>, vector<1x128xf32>
      %53 = arith.mulf %46, %46 : vector<32x128xf32>
      %cst_23 = arith.constant dense<0.000000e+00> : vector<128xf32>
      %54 = vector.multi_reduction <add>, %53, %cst_23 [0] : vector<32x128xf32> to vector<128xf32>
      %55 = vector.shape_cast %54 : vector<128xf32> to vector<1x128xf32>
      %56 = arith.addf %52, %55 : vector<1x128xf32>
      %c1_24 = arith.constant 1 : index
      %c0_25 = arith.constant 0 : index
      %57 = vector.load %arg8[%c1_24, %c0_25] : memref<6x128xf32, #tpu.memory_space<vmem>>, vector<1x128xf32>
      tpu.vector_store %arg8[%c1_24, %c0_25], %56 {strides = array<i32>} : memref<6x128xf32, #tpu.memory_space<vmem>>, vector<1x128xf32>,
      %c0_i32_26 = arith.constant 0 : i32
      %58 = arith.cmpi eq, %arg1, %c0_i32_26 : i32
      %59 = arith.extui %58 : i1 to i32
      %c0_i32_27 = arith.constant 0 : i32
      %60 = arith.cmpi ne, %59, %c0_i32_27 : i32
      scf.if %60 {
        %c0_28 = arith.constant 0 : index
        %c0_29 = arith.constant 0 : index
        %61 = vector.load %arg8[%c0_28, %c0_29] : memref<6x128xf32, #tpu.memory_space<vmem>>, vector<1x128xf32>
        %c1_30 = arith.constant 1 : index
        %c0_31 = arith.constant 0 : index
        %62 = vector.load %arg8[%c1_30, %c0_31] : memref<6x128xf32, #tpu.memory_space<vmem>>, vector<1x128xf32>
        %cst_32 = arith.constant 3.125000e-02 : f32
        %63 = vector.broadcast %cst_32 : f32 to vector<1x128xf32>
        %64 = arith.mulf %61, %63 : vector<1x128xf32>
        %cst_33 = arith.constant 3.125000e-02 : f32
        %65 = vector.broadcast %cst_33 : f32 to vector<1x128xf32>
        %66 = arith.mulf %62, %65 : vector<1x128xf32>
        %67 = arith.mulf %64, %64 : vector<1x128xf32>
        %68 = arith.subf %66, %67 : vector<1x128xf32>
        %cst_34 = arith.constant 0.000000e+00 : f32
        %69 = vector.broadcast %cst_34 : f32 to vector<1x128xf32>
        %70 = arith.maximumf %68, %69 : vector<1x128xf32>
        %c0_35 = arith.constant 0 : index
        %c0_36 = arith.constant 0 : index
        %71 = vector.load %arg6[%c0_35, %c0_36] : memref<6x128xf32, #tpu.memory_space<vmem>>, vector<1x128xf32>
        %c1_37 = arith.constant 1 : index
        %c0_38 = arith.constant 0 : index
        %72 = vector.load %arg6[%c1_37, %c0_38] : memref<6x128xf32, #tpu.memory_space<vmem>>, vector<1x128xf32>
        %cst_39 = arith.constant 9.99999974E-6 : f32
        %73 = vector.broadcast %cst_39 : f32 to vector<1x128xf32>
        %74 = arith.addf %70, %73 : vector<1x128xf32>
        %75 = math.rsqrt %74 : vector<1x128xf32>
        %76 = arith.mulf %71, %75 : vector<1x128xf32>
        %77 = arith.mulf %64, %76 : vector<1x128xf32>
        %78 = arith.subf %72, %77 : vector<1x128xf32>
        %c0_40 = arith.constant 0 : index
        %c0_41 = arith.constant 0 : index
        %79 = vector.load %arg9[%c0_40, %c0_41] : memref<6x128xf32, #tpu.memory_space<vmem>>, vector<1x128xf32>
        tpu.vector_store %arg9[%c0_40, %c0_41], %76 {strides = array<i32>} : memref<6x128xf32, #tpu.memory_space<vmem>>, vector<1x128xf32>,
        %c1_42 = arith.constant 1 : index
        %c0_43 = arith.constant 0 : index
        %80 = vector.load %arg9[%c1_42, %c0_43] : memref<6x128xf32, #tpu.memory_space<vmem>>, vector<1x128xf32>
        tpu.vector_store %arg9[%c1_42, %c0_43], %78 {strides = array<i32>} : memref<6x128xf32, #tpu.memory_space<vmem>>, vector<1x128xf32>,
      } else {
      }
    } else {
    }
    %c1_i32 = arith.constant 1 : i32
    %15 = arith.cmpi eq, %arg0, %c1_i32 : i32
    %16 = arith.extui %15 : i1 to i32
    %c0_i32_8 = arith.constant 0 : i32
    %17 = arith.cmpi ne, %16, %c0_i32_8 : i32
    scf.if %17 {
      %24 = vector.extract_strided_slice %11 {offsets = [0, 0], sizes = [32, 1], strides = [1, 1]} : vector<32x4xf32> to vector<32x1xf32>
      %c0_12 = arith.constant 0 : index
      %c0_13 = arith.constant 0 : index
      %25 = vector.load %arg3[%c0_12, %c0_13] : memref<4x128xf32, #tpu.memory_space<vmem>>, vector<1x128xf32>
      %26 = vector.broadcast %24 : vector<32x1xf32> to vector<32x128xf32>
      %27 = vector.broadcast %25 : vector<1x128xf32> to vector<32x128xf32>
      %28 = arith.mulf %26, %27 : vector<32x128xf32>
      %29 = vector.extract_strided_slice %11 {offsets = [0, 1], sizes = [32, 1], strides = [1, 1]} : vector<32x4xf32> to vector<32x1xf32>
      %c1 = arith.constant 1 : index
      %c0_14 = arith.constant 0 : index
      %30 = vector.load %arg3[%c1, %c0_14] : memref<4x128xf32, #tpu.memory_space<vmem>>, vector<1x128xf32>
      %31 = vector.broadcast %29 : vector<32x1xf32> to vector<32x128xf32>
      %32 = vector.broadcast %30 : vector<1x128xf32> to vector<32x128xf32>
      %33 = arith.mulf %31, %32 : vector<32x128xf32>
      %34 = arith.addf %28, %33 : vector<32x128xf32>
      %35 = vector.extract_strided_slice %11 {offsets = [0, 2], sizes = [32, 1], strides = [1, 1]} : vector<32x4xf32> to vector<32x1xf32>
      %c2 = arith.constant 2 : index
      %c0_15 = arith.constant 0 : index
      %36 = vector.load %arg3[%c2, %c0_15] : memref<4x128xf32, #tpu.memory_space<vmem>>, vector<1x128xf32>
      %37 = vector.broadcast %35 : vector<32x1xf32> to vector<32x128xf32>
      %38 = vector.broadcast %36 : vector<1x128xf32> to vector<32x128xf32>
      %39 = arith.mulf %37, %38 : vector<32x128xf32>
      %40 = arith.addf %34, %39 : vector<32x128xf32>
      %41 = vector.extract_strided_slice %11 {offsets = [0, 3], sizes = [32, 1], strides = [1, 1]} : vector<32x4xf32> to vector<32x1xf32>
      %c3 = arith.constant 3 : index
      %c0_16 = arith.constant 0 : index
      %42 = vector.load %arg3[%c3, %c0_16] : memref<4x128xf32, #tpu.memory_space<vmem>>, vector<1x128xf32>
      %43 = vector.broadcast %41 : vector<32x1xf32> to vector<32x128xf32>
      %44 = vector.broadcast %42 : vector<1x128xf32> to vector<32x128xf32>
      %45 = arith.mulf %43, %44 : vector<32x128xf32>
      %46 = arith.addf %40, %45 : vector<32x128xf32>
      %c0_17 = arith.constant 0 : index
      %c0_18 = arith.constant 0 : index
      %47 = vector.load %arg9[%c0_17, %c0_18] : memref<6x128xf32, #tpu.memory_space<vmem>>, vector<1x128xf32>
      %c1_19 = arith.constant 1 : index
      %c0_20 = arith.constant 0 : index
      %48 = vector.load %arg9[%c1_19, %c0_20] : memref<6x128xf32, #tpu.memory_space<vmem>>, vector<1x128xf32>
      %49 = vector.broadcast %47 : vector<1x128xf32> to vector<32x128xf32>
      %50 = arith.mulf %46, %49 : vector<32x128xf32>
      %51 = vector.broadcast %48 : vector<1x128xf32> to vector<32x128xf32>
      %52 = arith.addf %50, %51 : vector<32x128xf32>
      %cst = arith.constant 0.000000e+00 : f32
      %53 = vector.broadcast %cst : f32 to vector<32x128xf32>
      %54 = arith.maximumf %52, %53 : vector<32x128xf32>
      %c0_21 = arith.constant 0 : index
      %c0_22 = arith.constant 0 : index
      %55 = vector.load %arg4[%c0_21, %c0_22] : memref<128x128xf32, #tpu.memory_space<vmem>>, vector<128x128xf32>
      %cst_23 = arith.constant dense<0.000000e+00> : vector<32x128xf32>
      %56 = tpu.matmul %54, %55, %cst_23 {dimension_numbers = #tpu.dot_dimension_numbers<[1], [0], [0], [1], [0, 0, 1, 1], [], []>} : vector<32x128xf32>, vector<128x128xf32>, vector<32x128xf32> -> vector<32x128xf32>
      %c2_24 = arith.constant 2 : index
      %c0_25 = arith.constant 0 : index
      %57 = vector.load %arg8[%c2_24, %c0_25] : memref<6x128xf32, #tpu.memory_space<vmem>>, vector<1x128xf32>
      %cst_26 = arith.constant dense<0.000000e+00> : vector<128xf32>
      %58 = vector.multi_reduction <add>, %56, %cst_26 [0] : vector<32x128xf32> to vector<128xf32>
      %59 = vector.shape_cast %58 : vector<128xf32> to vector<1x128xf32>
      %60 = arith.addf %57, %59 : vector<1x128xf32>
      %c2_27 = arith.constant 2 : index
      %c0_28 = arith.constant 0 : index
      %61 = vector.load %arg8[%c2_27, %c0_28] : memref<6x128xf32, #tpu.memory_space<vmem>>, vector<1x128xf32>
      tpu.vector_store %arg8[%c2_27, %c0_28], %60 {strides = array<i32>} : memref<6x128xf32, #tpu.memory_space<vmem>>, vector<1x128xf32>,
      %c3_29 = arith.constant 3 : index
      %c0_30 = arith.constant 0 : index
      %62 = vector.load %arg8[%c3_29, %c0_30] : memref<6x128xf32, #tpu.memory_space<vmem>>, vector<1x128xf32>
      %63 = arith.mulf %56, %56 : vector<32x128xf32>
      %cst_31 = arith.constant dense<0.000000e+00> : vector<128xf32>
      %64 = vector.multi_reduction <add>, %63, %cst_31 [0] : vector<32x128xf32> to vector<128xf32>
      %65 = vector.shape_cast %64 : vector<128xf32> to vector<1x128xf32>
      %66 = arith.addf %62, %65 : vector<1x128xf32>
      %c3_32 = arith.constant 3 : index
      %c0_33 = arith.constant 0 : index
      %67 = vector.load %arg8[%c3_32, %c0_33] : memref<6x128xf32, #tpu.memory_space<vmem>>, vector<1x128xf32>
      tpu.vector_store %arg8[%c3_32, %c0_33], %66 {strides = array<i32>} : memref<6x128xf32, #tpu.memory_space<vmem>>, vector<1x128xf32>,
      %c0_i32_34 = arith.constant 0 : i32
      %68 = arith.cmpi eq, %arg1, %c0_i32_34 : i32
      %69 = arith.extui %68 : i1 to i32
      %c0_i32_35 = arith.constant 0 : i32
      %70 = arith.cmpi ne, %69, %c0_i32_35 : i32
      scf.if %70 {
        %c2_36 = arith.constant 2 : index
        %c0_37 = arith.constant 0 : index
        %71 = vector.load %arg8[%c2_36, %c0_37] : memref<6x128xf32, #tpu.memory_space<vmem>>, vector<1x128xf32>
        %c3_38 = arith.constant 3 : index
        %c0_39 = arith.constant 0 : index
        %72 = vector.load %arg8[%c3_38, %c0_39] : memref<6x128xf32, #tpu.memory_space<vmem>>, vector<1x128xf32>
        %cst_40 = arith.constant 3.125000e-02 : f32
        %73 = vector.broadcast %cst_40 : f32 to vector<1x128xf32>
        %74 = arith.mulf %71, %73 : vector<1x128xf32>
        %cst_41 = arith.constant 3.125000e-02 : f32
        %75 = vector.broadcast %cst_41 : f32 to vector<1x128xf32>
        %76 = arith.mulf %72, %75 : vector<1x128xf32>
        %77 = arith.mulf %74, %74 : vector<1x128xf32>
        %78 = arith.subf %76, %77 : vector<1x128xf32>
        %cst_42 = arith.constant 0.000000e+00 : f32
        %79 = vector.broadcast %cst_42 : f32 to vector<1x128xf32>
        %80 = arith.maximumf %78, %79 : vector<1x128xf32>
        %c2_43 = arith.constant 2 : index
        %c0_44 = arith.constant 0 : index
        %81 = vector.load %arg6[%c2_43, %c0_44] : memref<6x128xf32, #tpu.memory_space<vmem>>, vector<1x128xf32>
        %c3_45 = arith.constant 3 : index
        %c0_46 = arith.constant 0 : index
        %82 = vector.load %arg6[%c3_45, %c0_46] : memref<6x128xf32, #tpu.memory_space<vmem>>, vector<1x128xf32>
        %cst_47 = arith.constant 9.99999974E-6 : f32
        %83 = vector.broadcast %cst_47 : f32 to vector<1x128xf32>
        %84 = arith.addf %80, %83 : vector<1x128xf32>
        %85 = math.rsqrt %84 : vector<1x128xf32>
        %86 = arith.mulf %81, %85 : vector<1x128xf32>
        %87 = arith.mulf %74, %86 : vector<1x128xf32>
        %88 = arith.subf %82, %87 : vector<1x128xf32>
        %c2_48 = arith.constant 2 : index
        %c0_49 = arith.constant 0 : index
        %89 = vector.load %arg9[%c2_48, %c0_49] : memref<6x128xf32, #tpu.memory_space<vmem>>, vector<1x128xf32>
        tpu.vector_store %arg9[%c2_48, %c0_49], %86 {strides = array<i32>} : memref<6x128xf32, #tpu.memory_space<vmem>>, vector<1x128xf32>,
        %c3_50 = arith.constant 3 : index
        %c0_51 = arith.constant 0 : index
        %90 = vector.load %arg9[%c3_50, %c0_51] : memref<6x128xf32, #tpu.memory_space<vmem>>, vector<1x128xf32>
        tpu.vector_store %arg9[%c3_50, %c0_51], %88 {strides = array<i32>} : memref<6x128xf32, #tpu.memory_space<vmem>>, vector<1x128xf32>,
      } else {
      }
    } else {
    }
    %c2_i32 = arith.constant 2 : i32
    %18 = arith.cmpi eq, %arg0, %c2_i32 : i32
    %19 = arith.extui %18 : i1 to i32
    %c0_i32_9 = arith.constant 0 : i32
    %20 = arith.cmpi ne, %19, %c0_i32_9 : i32
    scf.if %20 {
      %24 = vector.extract_strided_slice %11 {offsets = [0, 0], sizes = [32, 1], strides = [1, 1]} : vector<32x4xf32> to vector<32x1xf32>
      %c0_12 = arith.constant 0 : index
      %c0_13 = arith.constant 0 : index
      %25 = vector.load %arg3[%c0_12, %c0_13] : memref<4x128xf32, #tpu.memory_space<vmem>>, vector<1x128xf32>
      %26 = vector.broadcast %24 : vector<32x1xf32> to vector<32x128xf32>
      %27 = vector.broadcast %25 : vector<1x128xf32> to vector<32x128xf32>
      %28 = arith.mulf %26, %27 : vector<32x128xf32>
      %29 = vector.extract_strided_slice %11 {offsets = [0, 1], sizes = [32, 1], strides = [1, 1]} : vector<32x4xf32> to vector<32x1xf32>
      %c1 = arith.constant 1 : index
      %c0_14 = arith.constant 0 : index
      %30 = vector.load %arg3[%c1, %c0_14] : memref<4x128xf32, #tpu.memory_space<vmem>>, vector<1x128xf32>
      %31 = vector.broadcast %29 : vector<32x1xf32> to vector<32x128xf32>
      %32 = vector.broadcast %30 : vector<1x128xf32> to vector<32x128xf32>
      %33 = arith.mulf %31, %32 : vector<32x128xf32>
      %34 = arith.addf %28, %33 : vector<32x128xf32>
      %35 = vector.extract_strided_slice %11 {offsets = [0, 2], sizes = [32, 1], strides = [1, 1]} : vector<32x4xf32> to vector<32x1xf32>
      %c2 = arith.constant 2 : index
      %c0_15 = arith.constant 0 : index
      %36 = vector.load %arg3[%c2, %c0_15] : memref<4x128xf32, #tpu.memory_space<vmem>>, vector<1x128xf32>
      %37 = vector.broadcast %35 : vector<32x1xf32> to vector<32x128xf32>
      %38 = vector.broadcast %36 : vector<1x128xf32> to vector<32x128xf32>
      %39 = arith.mulf %37, %38 : vector<32x128xf32>
      %40 = arith.addf %34, %39 : vector<32x128xf32>
      %41 = vector.extract_strided_slice %11 {offsets = [0, 3], sizes = [32, 1], strides = [1, 1]} : vector<32x4xf32> to vector<32x1xf32>
      %c3 = arith.constant 3 : index
      %c0_16 = arith.constant 0 : index
      %42 = vector.load %arg3[%c3, %c0_16] : memref<4x128xf32, #tpu.memory_space<vmem>>, vector<1x128xf32>
      %43 = vector.broadcast %41 : vector<32x1xf32> to vector<32x128xf32>
      %44 = vector.broadcast %42 : vector<1x128xf32> to vector<32x128xf32>
      %45 = arith.mulf %43, %44 : vector<32x128xf32>
      %46 = arith.addf %40, %45 : vector<32x128xf32>
      %c0_17 = arith.constant 0 : index
      %c0_18 = arith.constant 0 : index
      %47 = vector.load %arg9[%c0_17, %c0_18] : memref<6x128xf32, #tpu.memory_space<vmem>>, vector<1x128xf32>
      %c1_19 = arith.constant 1 : index
      %c0_20 = arith.constant 0 : index
      %48 = vector.load %arg9[%c1_19, %c0_20] : memref<6x128xf32, #tpu.memory_space<vmem>>, vector<1x128xf32>
      %49 = vector.broadcast %47 : vector<1x128xf32> to vector<32x128xf32>
      %50 = arith.mulf %46, %49 : vector<32x128xf32>
      %51 = vector.broadcast %48 : vector<1x128xf32> to vector<32x128xf32>
      %52 = arith.addf %50, %51 : vector<32x128xf32>
      %cst = arith.constant 0.000000e+00 : f32
      %53 = vector.broadcast %cst : f32 to vector<32x128xf32>
      %54 = arith.maximumf %52, %53 : vector<32x128xf32>
      %c0_21 = arith.constant 0 : index
      %c0_22 = arith.constant 0 : index
      %55 = vector.load %arg4[%c0_21, %c0_22] : memref<128x128xf32, #tpu.memory_space<vmem>>, vector<128x128xf32>
      %cst_23 = arith.constant dense<0.000000e+00> : vector<32x128xf32>
      %56 = tpu.matmul %54, %55, %cst_23 {dimension_numbers = #tpu.dot_dimension_numbers<[1], [0], [0], [1], [0, 0, 1, 1], [], []>} : vector<32x128xf32>, vector<128x128xf32>, vector<32x128xf32> -> vector<32x128xf32>
      %c2_24 = arith.constant 2 : index
      %c0_25 = arith.constant 0 : index
      %57 = vector.load %arg9[%c2_24, %c0_25] : memref<6x128xf32, #tpu.memory_space<vmem>>, vector<1x128xf32>
      %c3_26 = arith.constant 3 : index
      %c0_27 = arith.constant 0 : index
      %58 = vector.load %arg9[%c3_26, %c0_27] : memref<6x128xf32, #tpu.memory_space<vmem>>, vector<1x128xf32>
      %59 = vector.broadcast %57 : vector<1x128xf32> to vector<32x128xf32>
      %60 = arith.mulf %56, %59 : vector<32x128xf32>
      %61 = vector.broadcast %58 : vector<1x128xf32> to vector<32x128xf32>
      %62 = arith.addf %60, %61 : vector<32x128xf32>
      %cst_28 = arith.constant 0.000000e+00 : f32
      %63 = vector.broadcast %cst_28 : f32 to vector<32x128xf32>
      %64 = arith.maximumf %62, %63 : vector<32x128xf32>
      %c0_29 = arith.constant 0 : index
      %c0_30 = arith.constant 0 : index
      %65 = vector.load %arg5[%c0_29, %c0_30] : memref<128x128xf32, #tpu.memory_space<vmem>>, vector<128x128xf32>
      %cst_31 = arith.constant dense<0.000000e+00> : vector<32x128xf32>
      %66 = tpu.matmul %64, %65, %cst_31 {dimension_numbers = #tpu.dot_dimension_numbers<[1], [0], [0], [1], [0, 0, 1, 1], [], []>} : vector<32x128xf32>, vector<128x128xf32>, vector<32x128xf32> -> vector<32x128xf32>
      %c4 = arith.constant 4 : index
      %c0_32 = arith.constant 0 : index
      %67 = vector.load %arg8[%c4, %c0_32] : memref<6x128xf32, #tpu.memory_space<vmem>>, vector<1x128xf32>
      %cst_33 = arith.constant dense<0.000000e+00> : vector<128xf32>
      %68 = vector.multi_reduction <add>, %66, %cst_33 [0] : vector<32x128xf32> to vector<128xf32>
      %69 = vector.shape_cast %68 : vector<128xf32> to vector<1x128xf32>
      %70 = arith.addf %67, %69 : vector<1x128xf32>
      %c4_34 = arith.constant 4 : index
      %c0_35 = arith.constant 0 : index
      %71 = vector.load %arg8[%c4_34, %c0_35] : memref<6x128xf32, #tpu.memory_space<vmem>>, vector<1x128xf32>
      tpu.vector_store %arg8[%c4_34, %c0_35], %70 {strides = array<i32>} : memref<6x128xf32, #tpu.memory_space<vmem>>, vector<1x128xf32>,
      %c5 = arith.constant 5 : index
      %c0_36 = arith.constant 0 : index
      %72 = vector.load %arg8[%c5, %c0_36] : memref<6x128xf32, #tpu.memory_space<vmem>>, vector<1x128xf32>
      %73 = arith.mulf %66, %66 : vector<32x128xf32>
      %cst_37 = arith.constant dense<0.000000e+00> : vector<128xf32>
      %74 = vector.multi_reduction <add>, %73, %cst_37 [0] : vector<32x128xf32> to vector<128xf32>
      %75 = vector.shape_cast %74 : vector<128xf32> to vector<1x128xf32>
      %76 = arith.addf %72, %75 : vector<1x128xf32>
      %c5_38 = arith.constant 5 : index
      %c0_39 = arith.constant 0 : index
      %77 = vector.load %arg8[%c5_38, %c0_39] : memref<6x128xf32, #tpu.memory_space<vmem>>, vector<1x128xf32>
      tpu.vector_store %arg8[%c5_38, %c0_39], %76 {strides = array<i32>} : memref<6x128xf32, #tpu.memory_space<vmem>>, vector<1x128xf32>,
      %c0_i32_40 = arith.constant 0 : i32
      %78 = arith.cmpi eq, %arg1, %c0_i32_40 : i32
      %79 = arith.extui %78 : i1 to i32
      %c0_i32_41 = arith.constant 0 : i32
      %80 = arith.cmpi ne, %79, %c0_i32_41 : i32
      scf.if %80 {
        %c4_42 = arith.constant 4 : index
        %c0_43 = arith.constant 0 : index
        %81 = vector.load %arg8[%c4_42, %c0_43] : memref<6x128xf32, #tpu.memory_space<vmem>>, vector<1x128xf32>
        %c5_44 = arith.constant 5 : index
        %c0_45 = arith.constant 0 : index
        %82 = vector.load %arg8[%c5_44, %c0_45] : memref<6x128xf32, #tpu.memory_space<vmem>>, vector<1x128xf32>
        %cst_46 = arith.constant 3.125000e-02 : f32
        %83 = vector.broadcast %cst_46 : f32 to vector<1x128xf32>
        %84 = arith.mulf %81, %83 : vector<1x128xf32>
        %cst_47 = arith.constant 3.125000e-02 : f32
        %85 = vector.broadcast %cst_47 : f32 to vector<1x128xf32>
        %86 = arith.mulf %82, %85 : vector<1x128xf32>
        %87 = arith.mulf %84, %84 : vector<1x128xf32>
        %88 = arith.subf %86, %87 : vector<1x128xf32>
        %cst_48 = arith.constant 0.000000e+00 : f32
        %89 = vector.broadcast %cst_48 : f32 to vector<1x128xf32>
        %90 = arith.maximumf %88, %89 : vector<1x128xf32>
        %c4_49 = arith.constant 4 : index
        %c0_50 = arith.constant 0 : index
        %91 = vector.load %arg6[%c4_49, %c0_50] : memref<6x128xf32, #tpu.memory_space<vmem>>, vector<1x128xf32>
        %c5_51 = arith.constant 5 : index
        %c0_52 = arith.constant 0 : index
        %92 = vector.load %arg6[%c5_51, %c0_52] : memref<6x128xf32, #tpu.memory_space<vmem>>, vector<1x128xf32>
        %cst_53 = arith.constant 9.99999974E-6 : f32
        %93 = vector.broadcast %cst_53 : f32 to vector<1x128xf32>
        %94 = arith.addf %90, %93 : vector<1x128xf32>
        %95 = math.rsqrt %94 : vector<1x128xf32>
        %96 = arith.mulf %91, %95 : vector<1x128xf32>
        %97 = arith.mulf %84, %96 : vector<1x128xf32>
        %98 = arith.subf %92, %97 : vector<1x128xf32>
        %c4_54 = arith.constant 4 : index
        %c0_55 = arith.constant 0 : index
        %99 = vector.load %arg9[%c4_54, %c0_55] : memref<6x128xf32, #tpu.memory_space<vmem>>, vector<1x128xf32>
        tpu.vector_store %arg9[%c4_54, %c0_55], %96 {strides = array<i32>} : memref<6x128xf32, #tpu.memory_space<vmem>>, vector<1x128xf32>,
        %c5_56 = arith.constant 5 : index
        %c0_57 = arith.constant 0 : index
        %100 = vector.load %arg9[%c5_56, %c0_57] : memref<6x128xf32, #tpu.memory_space<vmem>>, vector<1x128xf32>
        tpu.vector_store %arg9[%c5_56, %c0_57], %98 {strides = array<i32>} : memref<6x128xf32, #tpu.memory_space<vmem>>, vector<1x128xf32>,
      } else {
      }
    } else {
    }
    %c3_i32_10 = arith.constant 3 : i32
    %21 = arith.cmpi eq, %arg0, %c3_i32_10 : i32
    %22 = arith.extui %21 : i1 to i32
    %c0_i32_11 = arith.constant 0 : i32
    %23 = arith.cmpi ne, %22, %c0_i32_11 : i32
    scf.if %23 {
      %24 = vector.extract_strided_slice %11 {offsets = [0, 0], sizes = [32, 1], strides = [1, 1]} : vector<32x4xf32> to vector<32x1xf32>
      %c0_12 = arith.constant 0 : index
      %c0_13 = arith.constant 0 : index
      %25 = vector.load %arg3[%c0_12, %c0_13] : memref<4x128xf32, #tpu.memory_space<vmem>>, vector<1x128xf32>
      %26 = vector.broadcast %24 : vector<32x1xf32> to vector<32x128xf32>
      %27 = vector.broadcast %25 : vector<1x128xf32> to vector<32x128xf32>
      %28 = arith.mulf %26, %27 : vector<32x128xf32>
      %29 = vector.extract_strided_slice %11 {offsets = [0, 1], sizes = [32, 1], strides = [1, 1]} : vector<32x4xf32> to vector<32x1xf32>
      %c1 = arith.constant 1 : index
      %c0_14 = arith.constant 0 : index
      %30 = vector.load %arg3[%c1, %c0_14] : memref<4x128xf32, #tpu.memory_space<vmem>>, vector<1x128xf32>
      %31 = vector.broadcast %29 : vector<32x1xf32> to vector<32x128xf32>
      %32 = vector.broadcast %30 : vector<1x128xf32> to vector<32x128xf32>
      %33 = arith.mulf %31, %32 : vector<32x128xf32>
      %34 = arith.addf %28, %33 : vector<32x128xf32>
      %35 = vector.extract_strided_slice %11 {offsets = [0, 2], sizes = [32, 1], strides = [1, 1]} : vector<32x4xf32> to vector<32x1xf32>
      %c2 = arith.constant 2 : index
      %c0_15 = arith.constant 0 : index
      %36 = vector.load %arg3[%c2, %c0_15] : memref<4x128xf32, #tpu.memory_space<vmem>>, vector<1x128xf32>
      %37 = vector.broadcast %35 : vector<32x1xf32> to vector<32x128xf32>
      %38 = vector.broadcast %36 : vector<1x128xf32> to vector<32x128xf32>
      %39 = arith.mulf %37, %38 : vector<32x128xf32>
      %40 = arith.addf %34, %39 : vector<32x128xf32>
      %41 = vector.extract_strided_slice %11 {offsets = [0, 3], sizes = [32, 1], strides = [1, 1]} : vector<32x4xf32> to vector<32x1xf32>
      %c3 = arith.constant 3 : index
      %c0_16 = arith.constant 0 : index
      %42 = vector.load %arg3[%c3, %c0_16] : memref<4x128xf32, #tpu.memory_space<vmem>>, vector<1x128xf32>
      %43 = vector.broadcast %41 : vector<32x1xf32> to vector<32x128xf32>
      %44 = vector.broadcast %42 : vector<1x128xf32> to vector<32x128xf32>
      %45 = arith.mulf %43, %44 : vector<32x128xf32>
      %46 = arith.addf %40, %45 : vector<32x128xf32>
      %c0_17 = arith.constant 0 : index
      %c0_18 = arith.constant 0 : index
      %47 = vector.load %arg9[%c0_17, %c0_18] : memref<6x128xf32, #tpu.memory_space<vmem>>, vector<1x128xf32>
      %c1_19 = arith.constant 1 : index
      %c0_20 = arith.constant 0 : index
      %48 = vector.load %arg9[%c1_19, %c0_20] : memref<6x128xf32, #tpu.memory_space<vmem>>, vector<1x128xf32>
      %49 = vector.broadcast %47 : vector<1x128xf32> to vector<32x128xf32>
      %50 = arith.mulf %46, %49 : vector<32x128xf32>
      %51 = vector.broadcast %48 : vector<1x128xf32> to vector<32x128xf32>
      %52 = arith.addf %50, %51 : vector<32x128xf32>
      %cst = arith.constant 0.000000e+00 : f32
      %53 = vector.broadcast %cst : f32 to vector<32x128xf32>
      %54 = arith.maximumf %52, %53 : vector<32x128xf32>
      %c0_21 = arith.constant 0 : index
      %c0_22 = arith.constant 0 : index
      %55 = vector.load %arg4[%c0_21, %c0_22] : memref<128x128xf32, #tpu.memory_space<vmem>>, vector<128x128xf32>
      %cst_23 = arith.constant dense<0.000000e+00> : vector<32x128xf32>
      %56 = tpu.matmul %54, %55, %cst_23 {dimension_numbers = #tpu.dot_dimension_numbers<[1], [0], [0], [1], [0, 0, 1, 1], [], []>} : vector<32x128xf32>, vector<128x128xf32>, vector<32x128xf32> -> vector<32x128xf32>
      %c2_24 = arith.constant 2 : index
      %c0_25 = arith.constant 0 : index
      %57 = vector.load %arg9[%c2_24, %c0_25] : memref<6x128xf32, #tpu.memory_space<vmem>>, vector<1x128xf32>
      %c3_26 = arith.constant 3 : index
      %c0_27 = arith.constant 0 : index
      %58 = vector.load %arg9[%c3_26, %c0_27] : memref<6x128xf32, #tpu.memory_space<vmem>>, vector<1x128xf32>
      %59 = vector.broadcast %57 : vector<1x128xf32> to vector<32x128xf32>
      %60 = arith.mulf %56, %59 : vector<32x128xf32>
      %61 = vector.broadcast %58 : vector<1x128xf32> to vector<32x128xf32>
      %62 = arith.addf %60, %61 : vector<32x128xf32>
      %cst_28 = arith.constant 0.000000e+00 : f32
      %63 = vector.broadcast %cst_28 : f32 to vector<32x128xf32>
      %64 = arith.maximumf %62, %63 : vector<32x128xf32>
      %c0_29 = arith.constant 0 : index
      %c0_30 = arith.constant 0 : index
      %65 = vector.load %arg5[%c0_29, %c0_30] : memref<128x128xf32, #tpu.memory_space<vmem>>, vector<128x128xf32>
      %cst_31 = arith.constant dense<0.000000e+00> : vector<32x128xf32>
      %66 = tpu.matmul %64, %65, %cst_31 {dimension_numbers = #tpu.dot_dimension_numbers<[1], [0], [0], [1], [0, 0, 1, 1], [], []>} : vector<32x128xf32>, vector<128x128xf32>, vector<32x128xf32> -> vector<32x128xf32>
      %c4 = arith.constant 4 : index
      %c0_32 = arith.constant 0 : index
      %67 = vector.load %arg9[%c4, %c0_32] : memref<6x128xf32, #tpu.memory_space<vmem>>, vector<1x128xf32>
      %c5 = arith.constant 5 : index
      %c0_33 = arith.constant 0 : index
      %68 = vector.load %arg9[%c5, %c0_33] : memref<6x128xf32, #tpu.memory_space<vmem>>, vector<1x128xf32>
      %69 = vector.broadcast %67 : vector<1x128xf32> to vector<32x128xf32>
      %70 = arith.mulf %66, %69 : vector<32x128xf32>
      %71 = vector.broadcast %68 : vector<1x128xf32> to vector<32x128xf32>
      %72 = arith.addf %70, %71 : vector<32x128xf32>
      %cst_34 = arith.constant 0.000000e+00 : f32
      %73 = vector.broadcast %cst_34 : f32 to vector<32x128xf32>
      %74 = arith.maximumf %72, %73 : vector<32x128xf32>
      %75 = vector.shape_cast %74 : vector<32x128xf32> to vector<2x16x128xf32>
      %cst_35 = arith.constant dense<0xFF800000> : vector<2x128xf32>
      %76 = vector.multi_reduction <maximumf>, %75, %cst_35 [1] : vector<2x16x128xf32> to vector<2x128xf32>
      %c0_36 = arith.constant 0 : index
      %c0_37 = arith.constant 0 : index
      %77 = vector.load %arg7[%c0_36, %c0_37] : memref<2x128xf32, #tpu.memory_space<vmem>>, vector<2x128xf32>
      %78 = arith.maximumf %77, %76 : vector<2x128xf32>
      %c0_38 = arith.constant 0 : index
      %c0_39 = arith.constant 0 : index
      %79 = vector.load %arg7[%c0_38, %c0_39] : memref<2x128xf32, #tpu.memory_space<vmem>>, vector<2x128xf32>
      tpu.vector_store %arg7[%c0_38, %c0_39], %78 {strides = array<i32>} : memref<2x128xf32, #tpu.memory_space<vmem>>, vector<2x128xf32>,
    } else {
    }
    return
  }
  func.func @transform_0(%arg0: i32, %arg1: i32) -> (i32, i32, i32) {
    %c0_i32 = arith.constant 0 : i32
    %c0_i32_0 = arith.constant 0 : i32
    %c0_i32_1 = arith.constant 0 : i32
    return %c0_i32, %arg1, %c0_i32_0 : i32, i32, i32
  }
  func.func @transform_1(%arg0: i32, %arg1: i32) -> (i32, i32) {
    %c0_i32 = arith.constant 0 : i32
    %c0_i32_0 = arith.constant 0 : i32
    %c0_i32_1 = arith.constant 0 : i32
    return %c0_i32, %c0_i32_0 : i32, i32
  }
  func.func @transform_2(%arg0: i32, %arg1: i32) -> (i32, i32) {
    %c0_i32 = arith.constant 0 : i32
    %c0_i32_0 = arith.constant 0 : i32
    %c0_i32_1 = arith.constant 0 : i32
    return %c0_i32, %c0_i32_0 : i32, i32
  }
  func.func @transform_3(%arg0: i32, %arg1: i32) -> (i32, i32) {
    %c0_i32 = arith.constant 0 : i32
    %c0_i32_0 = arith.constant 0 : i32
    %c0_i32_1 = arith.constant 0 : i32
    return %c0_i32, %c0_i32_0 : i32, i32
  }
  func.func @transform_4(%arg0: i32, %arg1: i32) -> (i32, i32) {
    %c0_i32 = arith.constant 0 : i32
    %c0_i32_0 = arith.constant 0 : i32
    %c0_i32_1 = arith.constant 0 : i32
    return %c0_i32, %c0_i32_0 : i32, i32
  }
  func.func @transform_5(%arg0: i32, %arg1: i32) -> (i32, i32) {
    %c0_i32 = arith.constant 0 : i32
    %c0_i32_0 = arith.constant 0 : i32
    %c0_i32_1 = arith.constant 0 : i32
    return %c0_i32, %c0_i32_0 : i32, i32
  }
}

</mosaic_0001>

<llo_original>
// kernel: tpu_custom_call.1
$region0: #{tpu_custom_call.1}
  #allocation0 [shape = 'u32[]', space=smem, size = 0x4, offset = 0x4, fixed_abs, tag = 'smem constant byte address 0x4 - core index']
  #allocation1 [shape = 'u32[72,128]{1,0:T(1,128)}', space=vmem, size = 0x9000, scoped, tag = 'internal scratch']
  #allocation2 [shape = 'f32[6,128]{1,0:T(8,128)}', space=vmem, size = 0x1000, scoped, tag = 'scratch operand']
  #allocation3 [shape = 'f32[6,128]{1,0:T(8,128)}', space=vmem, size = 0x1000, scoped, tag = 'scratch operand']
  %s0 = inlined_call_operand.vmem [shape: f32[2,16,4], index: 0, kind: input, shape index: {}]
  %s1 = inlined_call_operand.vmem [shape: f32[4,128], index: 1, kind: input, shape index: {}]
  %s2 = inlined_call_operand.hbm [shape: f32[128,128], index: 2, kind: input, shape index: {}]
  %s3 = inlined_call_operand.hbm [shape: f32[128,128], index: 3, kind: input, shape index: {}]
  %s4 = inlined_call_operand.vmem [shape: f32[6,128], index: 4, kind: input, shape index: {}]
  %s5 = inlined_call_operand.hbm [shape: f32[2,128], index: 5, kind: output, shape index: {}]
  %s6 = sld [smem:[#allocation0]]
  $region97: #{tpu_custom_call.1} parent=0
    _
  %s8 = ssub.s32 1, %s6
  %s9 = scalar_select 0, %s8, %s6
  $region1: #{tpu_custom_call.1} parent=0
    #allocation4 [shape = 'u8[65536]{0}', space=vmem, size = 0x10000, scoped, tag = 'input window, operand 2, single buffered']
    #allocation5 [shape = 's32[2]{0}', space=sflag, size = 0x8, scoped, tag = 'scoped memory for tpu_custom_call.1']
    #allocation6 [shape = 's32[2]{0}', space=sflag, size = 0x8, scoped, tag = 'scoped memory for tpu_custom_call.1']
    #allocation7 [shape = 'u8[65536]{0}', space=vmem, size = 0x10000, scoped, tag = 'input window, operand 3, single buffered']
    #allocation8 [shape = 's32[1]{0}', space=sflag, size = 0x4, scoped, tag = 'scoped memory for tpu_custom_call.1']
    #allocation9 [shape = 'u8[1024]{0}', space=vmem, size = 0x400, scoped, tag = 'output window, operand 0, single buffered']
    %10 = vsyncpa [#allocation5], 0
    %11 = vsyncpa [#allocation8], 0
    %12 = vsyncpa [#allocation6], 0
    loop: start=0, step=1, limit=6
    $region2: #{tpu_custom_call.1} parent=1 // loop_pre_header
      _
    $region3: #{tpu_custom_call.1} parent=1 // loop_header
      %s14 = sphi 0, %s18
      %p15 = scmp.ge.s32.totalorder %s14, 6
      %s21 = sphi 0, %s33
      %s22 = sphi 0, %s29
      %s23 = sphi 0, %s21
      %s24 = sphi 0, %s22
      %s25 = sphi 0, %s23
      %s26 = sphi 0, %s24
      %s36 = sphi 0, %s38
      %s39 = sphi 0, %s36
      %s40 = sphi 0, %s39
      %s56 = sphi 0, %s40
      %s60 = sphi 0, %s60
      %s62 = sphi 0, %s60
      %s63 = sphi 0, %s62
      %s77 = sphi 0, %s63
      %s81 = sphi 0, %s81
      %s83 = sphi 0, %s81
      %s84 = sphi 0, %s83
      %s98 = sphi 0, %s84
      %s102 = sphi 0, %s102
      %s104 = sphi 0, %s102
      %s105 = sphi 0, %s104
      %s119 = sphi 0, %s105
      %s123 = sphi 0, %s123
      %s125 = sphi 0, %s123
      %s126 = sphi 0, %s125
      %s140 = sphi 0, %s126
      %s144 = sphi 0, %s144
      %s146 = sphi 0, %s144
      %s147 = sphi 0, %s146
      %s161 = sphi 0, %s147
    $region4: #{tpu_custom_call.1} parent=1 // loop_header_branch
      %17 = sbr.rel (%p15) target = $region8
    $region5: #{tpu_custom_call.1} parent=1 // loop_body
      %s19 = ssub.s32 %s14, 1
      %s20 = ssub.s32 %s14, 2
      %s27 = sadd.s32 1, %s22
      %p28 = scmp.ge.s32.totalorder %s27, 1
      %s29 = scalar_select %p28, 0, %s27
      %s30 = sadd.s32 1, %s21
      %s31 = scalar_select %p28, %s30, %s21
      %p32 = scmp.ge.s32.totalorder %s31, 4
      %s33 = scalar_select %p32, 0, %s31
      %s34 = ssub.s32 %s22, %s29
      %p35 = scmp.eq.s32.totalorder %s34, 0
      %s37 = sadd.s32 %s36, 1
      %s38 = scalar_select %p35, %s36, %s37
      %p41 = pneg %p35
      %p42 = scmp.eq.s32.totalorder %s14, 3
      %p43 = por %p41, %p42
      %p44 = scmp.ne.s32.totalorder %s36, %s39
      %p45 = scmp.eq.s32.totalorder %s14, 0
      %p46 = por %p44, %p45
      %p47 = scmp.ne.s32.totalorder %s36, %s39
      %p48 = scmp.eq.s32.totalorder %s19, 3
      %p49 = por %p47, %p48
      %p50 = scmp.ne.s32.totalorder %s39, %s40
      %p51 = scmp.eq.s32.totalorder %s19, 0
      %p52 = por %p50, %p51
      %p53 = scmp.ne.s32.totalorder %s39, %s40
      %p54 = scmp.eq.s32.totalorder %s20, 3
      %p55 = por %p53, %p54
      %p57 = scmp.ne.s32.totalorder %s40, %s56
      %p58 = scmp.eq.s32.totalorder %s20, 0
      %p59 = por %p57, %p58
      %s61 = sadd.s32 %s60, 1
      %p64 = scmp.eq.s32.totalorder %s14, 3
      %p65 = scmp.ne.s32.totalorder %s60, %s62
      %p66 = scmp.eq.s32.totalorder %s14, 0
      %p67 = por %p65, %p66
      %p68 = scmp.ne.s32.totalorder %s60, %s62
      %p69 = scmp.eq.s32.totalorder %s19, 3
      %p70 = por %p68, %p69
      %p71 = scmp.ne.s32.totalorder %s62, %s63
      %p72 = scmp.eq.s32.totalorder %s19, 0
      %p73 = por %p71, %p72
      %p74 = scmp.ne.s32.totalorder %s62, %s63
      %p75 = scmp.eq.s32.totalorder %s20, 3
      %p76 = por %p74, %p75
      %p78 = scmp.ne.s32.totalorder %s63, %s77
      %p79 = scmp.eq.s32.totalorder %s20, 0
      %p80 = por %p78, %p79
      %s82 = sadd.s32 %s81, 1
      %p85 = scmp.eq.s32.totalorder %s14, 3
      %p86 = scmp.ne.s32.totalorder %s81, %s83
      %p87 = scmp.eq.s32.totalorder %s14, 0
      %p88 = por %p86, %p87
      %p89 = scmp.ne.s32.totalorder %s81, %s83
      %p90 = scmp.eq.s32.totalorder %s19, 3
      %p91 = por %p89, %p90
      %p92 = scmp.ne.s32.totalorder %s83, %s84
      %p93 = scmp.eq.s32.totalorder %s19, 0
      %p94 = por %p92, %p93
      %p95 = scmp.ne.s32.totalorder %s83, %s84
      %p96 = scmp.eq.s32.totalorder %s20, 3
      %p97 = por %p95, %p96
      %p99 = scmp.ne.s32.totalorder %s84, %s98
      %p100 = scmp.eq.s32.totalorder %s20, 0
      %p101 = por %p99, %p100
      %s103 = sadd.s32 %s102, 1
      %p106 = scmp.eq.s32.totalorder %s14, 3
      %p107 = scmp.ne.s32.totalorder %s102, %s104
      %p108 = scmp.eq.s32.totalorder %s14, 0
      %p109 = por %p107, %p108
      %p110 = scmp.ne.s32.totalorder %s102, %s104
      %p111 = scmp.eq.s32.totalorder %s19, 3
      %p112 = por %p110, %p111
      %p113 = scmp.ne.s32.totalorder %s104, %s105
      %p114 = scmp.eq.s32.totalorder %s19, 0
      %p115 = por %p113, %p114
      %p116 = scmp.ne.s32.totalorder %s104, %s105
      %p117 = scmp.eq.s32.totalorder %s20, 3
      %p118 = por %p116, %p117
      %p120 = scmp.ne.s32.totalorder %s105, %s119
      %p121 = scmp.eq.s32.totalorder %s20, 0
      %p122 = por %p120, %p121
      %s124 = sadd.s32 %s123, 1
      %p127 = scmp.eq.s32.totalorder %s14, 3
      %p128 = scmp.ne.s32.totalorder %s123, %s125
      %p129 = scmp.eq.s32.totalorder %s14, 0
      %p130 = por %p128, %p129
      %p131 = scmp.ne.s32.totalorder %s123, %s125
      %p132 = scmp.eq.s32.totalorder %s19, 3
      %p133 = por %p131, %p132
      %p134 = scmp.ne.s32.totalorder %s125, %s126
      %p135 = scmp.eq.s32.totalorder %s19, 0
      %p136 = por %p134, %p135
      %p137 = scmp.ne.s32.totalorder %s125, %s126
      %p138 = scmp.eq.s32.totalorder %s20, 3
      %p139 = por %p137, %p138
      %p141 = scmp.ne.s32.totalorder %s126, %s140
      %p142 = scmp.eq.s32.totalorder %s20, 0
      %p143 = por %p141, %p142
      %s145 = sadd.s32 %s144, 1
      %p148 = scmp.eq.s32.totalorder %s14, 3
      %p149 = scmp.ne.s32.totalorder %s144, %s146
      %p150 = scmp.eq.s32.totalorder %s14, 0
      %p151 = por %p149, %p150
      %p152 = scmp.ne.s32.totalorder %s144, %s146
      %p153 = scmp.eq.s32.totalorder %s19, 3
      %p154 = por %p152, %p153
      %p155 = scmp.ne.s32.totalorder %s146, %s147
      %p156 = scmp.eq.s32.totalorder %s19, 0
      %p157 = por %p155, %p156
      %p158 = scmp.ne.s32.totalorder %s146, %s147
      %p159 = scmp.eq.s32.totalorder %s20, 3
      %p160 = por %p158, %p159
      %p162 = scmp.ne.s32.totalorder %s147, %s161
      %p163 = scmp.eq.s32.totalorder %s20, 0
      %p164 = por %p162, %p163
      %p165 = scmp.le.s32.totalorder 1, %s14
      %p166 = scmp.lt.s32.totalorder %s14, 5
      %p167 = pnand %p165, %p166
      %p168 = pneg %p167
      // Predicated region
      $region9: #{tpu_custom_call.1} parent=5 // pred_check
        _
      $region10: #{tpu_custom_call.1} parent=5 // pred_check_branch
        %170 = sbr.rel (%p167) target = $region12
      $region11: #{tpu_custom_call.1} parent=5 // pred_region
        %s171 = ssub.s32 %s14, 1
        // Predicated region
        $region13: #{tpu_custom_call.1} parent=11 // pred_check
          %p172 = pneg %p52
        $region14: #{tpu_custom_call.1} parent=11 // pred_check_branch
          %174 = sbr.rel (%p172) target = $region16
        $region15: #{tpu_custom_call.1} parent=11 // pred_region
          %s175 = smul.u32 2, %s24
          %p176 = scmp.lt.s32.totalorder %s175, 1
          %s177 = scalar_select %p176, %s175, 1
          %s178 = smul.addr %s177, 8
          %s179 = scalar_lea.vmem %s0, %s178
          %s180 = smul.u32 2, %s24
        $region16: #{tpu_custom_call.1} parent=11 // pred_fallthru
          _
        // Predicated region
        $region17: #{tpu_custom_call.1} parent=11 // pred_check
          %p181 = pneg %p73
        $region18: #{tpu_custom_call.1} parent=11 // pred_check_branch
          %183 = sbr.rel (%p181) target = $region20
        $region19: #{tpu_custom_call.1} parent=11 // pred_region
          _
        $region20: #{tpu_custom_call.1} parent=11 // pred_fallthru
          _
        // Predicated region
        $region21: #{tpu_custom_call.1} parent=11 // pred_check
          %p184 = pneg %p94
        $region22: #{tpu_custom_call.1} parent=11 // pred_check_branch
          %186 = sbr.rel (%p184) target = $region24
        $region23: #{tpu_custom_call.1} parent=11 // pred_region
          %188 = vsyncadd [#allocation5], 0
          %s189 = sshll.u32 %s2, 4
          %s190 = int_to_ptr.hbm [resolvable:$true] %s189
          %s191 = sshll.u32 [#allocation4], 4
          %s192 = int_to_ptr.vmem [resolvable:$true] %s191
          %197 = dma.hbm_to_vmem [thread:$0]  %s190, 2048, %s192, [#allocation5], 128, 128, 8
        $region24: #{tpu_custom_call.1} parent=11 // pred_fallthru
          _
        // Predicated region
        $region25: #{tpu_custom_call.1} parent=11 // pred_check
          %p198 = pneg %p115
        $region26: #{tpu_custom_call.1} parent=11 // pred_check_branch
          %200 = sbr.rel (%p198) target = $region28
        $region27: #{tpu_custom_call.1} parent=11 // pred_region
          %202 = vsyncadd [#allocation8], 0
          %s203 = sshll.u32 %s3, 4
          %s204 = int_to_ptr.hbm [resolvable:$true] %s203
          %s205 = sshll.u32 [#allocation7], 4
          %s206 = int_to_ptr.vmem [resolvable:$true] %s205
          %211 = dma.hbm_to_vmem [thread:$0]  %s204, 2048, %s206, [#allocation8], 128, 128, 8
        $region28: #{tpu_custom_call.1} parent=11 // pred_fallthru
          _
        // Predicated region
        $region29: #{tpu_custom_call.1} parent=11 // pred_check
          %p212 = pneg %p136
        $region30: #{tpu_custom_call.1} parent=11 // pred_check_branch
          %214 = sbr.rel (%p212) target = $region32
        $region31: #{tpu_custom_call.1} parent=11 // pred_region
          _
        $region32: #{tpu_custom_call.1} parent=11 // pred_fallthru
          _
      $region12: #{tpu_custom_call.1} parent=5 // pred_fallthru
        _
      %p215 = scmp.lt.s32.totalorder %s14, 4
      // Predicated region
      $region33: #{tpu_custom_call.1} parent=5 // pred_check
        %p216 = pneg %p215
      $region34: #{tpu_custom_call.1} parent=5 // pred_check_branch
        %218 = sbr.rel (%p216) target = $region36
      $region35: #{tpu_custom_call.1} parent=5 // pred_region
        _
      $region36: #{tpu_custom_call.1} parent=5 // pred_fallthru
        _
      %p219 = scmp.le.s32.totalorder 1, %s14
      %p220 = scmp.lt.s32.totalorder %s14, 5
      %p221 = pnand %p219, %p220
      %p222 = pneg %p221
      // Predicated region
      $region37: #{tpu_custom_call.1} parent=5 // pred_check
        _
      $region38: #{tpu_custom_call.1} parent=5 // pred_check_branch
        %224 = sbr.rel (%p221) target = $region40
      $region39: #{tpu_custom_call.1} parent=5 // pred_region
        %s225 = ssub.s32 %s14, 1
        // Predicated region
        $region41: #{tpu_custom_call.1} parent=39 // pred_check
          %p226 = pneg %p94
        $region42: #{tpu_custom_call.1} parent=39 // pred_check_branch
          %228 = sbr.rel (%p226) target = $region44
        $region43: #{tpu_custom_call.1} parent=39 // pred_region
          %230 = dma.done [#allocation5], 2048
        $region44: #{tpu_custom_call.1} parent=39 // pred_fallthru
          _
        // Predicated region
        $region45: #{tpu_custom_call.1} parent=39 // pred_check
          %p231 = pneg %p115
        $region46: #{tpu_custom_call.1} parent=39 // pred_check_branch
          %233 = sbr.rel (%p231) target = $region48
        $region47: #{tpu_custom_call.1} parent=39 // pred_region
          %235 = dma.done [#allocation8], 2048
        $region48: #{tpu_custom_call.1} parent=39 // pred_fallthru
          _
        %s236 = smul.u32 2, %s24
        %p237 = scmp.lt.s32.totalorder %s236, 1
        %s238 = scalar_select %p237, %s236, 1
        %s239 = smul.addr %s238, 8
        %s240 = scalar_lea.vmem %s0, %s239
        %p241 = pneg %p52
        %p242 = pneg %p49
        %p243 = pneg %p73
        %p244 = pneg %p70
        %p245 = pneg %p94
        %p246 = pneg %p91
        %p247 = pneg %p115
        %p248 = pneg %p112
        %p249 = pneg %p136
        %p250 = pneg %p133
        %p251 = pneg %p157
        %p252 = pneg %p154
        %s253 = smul.u32 2, %s24
        %p254 = scmp.lt.s32.totalorder %s253, 1
        %s255 = scalar_select %p254, %s253, 1
        %s256 = smul.addr %s255, 8
        %s257 = scalar_lea.vmem %s0, %s256
        %s258 = smul.u32 2, %s24
        %p259 = scmp.eq.s32.totalorder %s23, 0
        %p260 = scmp.eq.s32.totalorder %s24, 0
        %p261 = pnand %p259, %p260
        %p262 = pneg %p261
        // Predicated region
        $region49: #{tpu_custom_call.1} parent=39 // pred_check
          _
        $region50: #{tpu_custom_call.1} parent=39 // pred_check_branch
          %264 = sbr.rel (%p261) target = $region52
        $region51: #{tpu_custom_call.1} parent=39 // pred_region
          %265 = vst [vmem:[#allocation2] sm:$0x3f] 0.0
        $region52: #{tpu_custom_call.1} parent=39 // pred_fallthru
          _
        %p266 = scmp.eq.s32.totalorder %s23, 3
        %p267 = pnand %p266, %p260
        %p268 = pneg %p267
        // Predicated region
        $region53: #{tpu_custom_call.1} parent=39 // pred_check
          _
        $region54: #{tpu_custom_call.1} parent=39 // pred_check_branch
          %270 = sbr.rel (%p267) target = $region56
        $region55: #{tpu_custom_call.1} parent=39 // pred_region
          %271 = vst [vmem:[#allocation9] sm:$0x3] 0.0
        $region56: #{tpu_custom_call.1} parent=39 // pred_fallthru
          _
        %v272 = vld [vmem:[%s257] sm:$0xff]
        %v273 = vld [vmem:[%s257 + $0x8] sm:$0xff]
        %v274 = vld [vmem:[%s257 + $0x10] sm:$0xff]
        %v275 = vld [vmem:[%s257 + $0x18] sm:$0xff]
        // Predicated region
        $region57: #{tpu_custom_call.1} parent=39 // pred_check
          %p276 = pneg %p259
        $region58: #{tpu_custom_call.1} parent=39 // pred_check_branch
          %278 = sbr.rel (%p276) target = $region60
        $region59: #{tpu_custom_call.1} parent=39 // pred_region
          %v279 = vld [vmem:[%s1] sm:$0x1]
          %281 = vset.pattern.permute.xlu0 0
          %282 = vperm.xlu0 %281, %v272
          %v283 = vpop.permute.xlu0 %282
          %286 = vset.pattern.permute.xlu0 0
          %287 = vperm.xlu0 %286, %v273
          %v288 = vpop.permute.xlu0 %287
          %291 = vset.pattern.permute.xlu0 0
          %292 = vperm.xlu0 %291, %v274
          %v293 = vpop.permute.xlu0 %292
          %296 = vset.pattern.permute.xlu0 0
          %297 = vperm.xlu0 %296, %v275
          %v298 = vpop.permute.xlu0 %297
          %v300 = vperm.slane %v279, 0
          %v301 = vmul.f32 %v283, %v300
          %v302 = vmul.f32 %v288, %v300
          %v303 = vmul.f32 %v293, %v300
          %v304 = vmul.f32 %v298, %v300
          %v305 = vld [vmem:[%s1 + $0x1] sm:$0x1]
          %306 = vset.pattern.permute.xlu0 1
          %307 = vperm.xlu0 %306, %v272
          %v308 = vpop.permute.xlu0 %307
          %310 = vset.pattern.permute.xlu0 1
          %311 = vperm.xlu0 %310, %v273
          %v312 = vpop.permute.xlu0 %311
          %314 = vset.pattern.permute.xlu0 1
          %315 = vperm.xlu0 %314, %v274
          %v316 = vpop.permute.xlu0 %315
          %318 = vset.pattern.permute.xlu0 1
          %319 = vperm.xlu0 %318, %v275
          %v320 = vpop.permute.xlu0 %319
          %v322 = vperm.slane %v305, 0
          %v323 = vmul.f32 %v308, %v322
          %v324 = vmul.f32 %v312, %v322
          %v325 = vmul.f32 %v316, %v322
          %v326 = vmul.f32 %v320, %v322
          %v327 = vadd.f32 %v301, %v323
          %v328 = vadd.f32 %v302, %v324
          %v329 = vadd.f32 %v303, %v325
          %v330 = vadd.f32 %v304, %v326
          %v331 = vld [vmem:[%s1 + $0x2] sm:$0x1]
          %332 = vset.pattern.permute.xlu0 2
          %333 = vperm.xlu0 %332, %v272
          %v334 = vpop.permute.xlu0 %333
          %336 = vset.pattern.permute.xlu0 2
          %337 = vperm.xlu0 %336, %v273
          %v338 = vpop.permute.xlu0 %337
          %340 = vset.pattern.permute.xlu0 2
          %341 = vperm.xlu0 %340, %v274
          %v342 = vpop.permute.xlu0 %341
          %344 = vset.pattern.permute.xlu0 2
          %345 = vperm.xlu0 %344, %v275
          %v346 = vpop.permute.xlu0 %345
          %v348 = vperm.slane %v331, 0
          %v349 = vmul.f32 %v334, %v348
          %v350 = vmul.f32 %v338, %v348
          %v351 = vmul.f32 %v342, %v348
          %v352 = vmul.f32 %v346, %v348
          %v353 = vadd.f32 %v327, %v349
          %v354 = vadd.f32 %v328, %v350
          %v355 = vadd.f32 %v329, %v351
          %v356 = vadd.f32 %v330, %v352
          %v357 = vld [vmem:[%s1 + $0x3] sm:$0x1]
          %358 = vset.pattern.permute.xlu0 3
          %359 = vperm.xlu0 %358, %v272
          %v360 = vpop.permute.xlu0 %359
          %362 = vset.pattern.permute.xlu0 3
          %363 = vperm.xlu0 %362, %v273
          %v364 = vpop.permute.xlu0 %363
          %366 = vset.pattern.permute.xlu0 3
          %367 = vperm.xlu0 %366, %v274
          %v368 = vpop.permute.xlu0 %367
          %370 = vset.pattern.permute.xlu0 3
          %371 = vperm.xlu0 %370, %v275
          %v372 = vpop.permute.xlu0 %371
          %v374 = vperm.slane %v357, 0
          %v375 = vmul.f32 %v360, %v374
          %v376 = vmul.f32 %v364, %v374
          %v377 = vmul.f32 %v368, %v374
          %v378 = vmul.f32 %v372, %v374
          %v379 = vadd.f32 %v353, %v375
          %v380 = vadd.f32 %v354, %v376
          %v381 = vadd.f32 %v355, %v377
          %v382 = vadd.f32 %v356, %v378
          %v383 = vld [vmem:[#allocation2] sm:$0x1]
          %v384 = vadd.f32 %v379, %v380
          %v385 = vadd.f32 %v384, %v381
          %v386 = vadd.f32 %v385, %v382
          %v387 = vrot.slane %v386, 4
          %v388 = vadd.f32 %v386, %v387
          %v389 = vrot.slane %v388, 2
          %v390 = vadd.f32 %v388, %v389
          %v391 = vrot.slane %v390, 1
          %v392 = vadd.f32 %v390, %v391
          %v393 = vadd.f32 %v383, %v392
          %394 = vst [vmem:[#allocation2] sm:$0x1] %v393
          %v395 = vld [vmem:[#allocation2 + $0x1] sm:$0x1]
          %v396 = vmul.f32 %v379, %v379
          %v397 = vmul.f32 %v380, %v380
          %v398 = vmul.f32 %v381, %v381
          %v399 = vmul.f32 %v382, %v382
          %v400 = vadd.f32 %v396, %v397
          %v401 = vadd.f32 %v400, %v398
          %v402 = vadd.f32 %v401, %v399
          %v403 = vrot.slane %v402, 4
          %v404 = vadd.f32 %v402, %v403
          %v405 = vrot.slane %v404, 2
          %v406 = vadd.f32 %v404, %v405
          %v407 = vrot.slane %v406, 1
          %v408 = vadd.f32 %v406, %v407
          %v409 = vadd.f32 %v395, %v408
          %410 = vst [vmem:[#allocation2 + $0x1] sm:$0x1] %v409
          // Predicated region
          $region61: #{tpu_custom_call.1} parent=59 // pred_check
            %p411 = pneg %p260
          $region62: #{tpu_custom_call.1} parent=59 // pred_check_branch
            %413 = sbr.rel (%p411) target = $region64
          $region63: #{tpu_custom_call.1} parent=59 // pred_region
            %v414 = vld [vmem:[#allocation2] sm:$0x1]
            %v415 = vld [vmem:[#allocation2 + $0x1] sm:$0x1]
            %v416 = vmul.f32 %v414, 0.03125
            %v417 = vmul.f32 %v415, 0.03125
            %v418 = vmul.f32 %v416, %v416
            %v419 = vsub.f32 %v417, %v418
            %v420 = vmax.f32 %v419, 0.0
            %v421 = vld [vmem:[%s4] sm:$0x1]
            %v422 = vld [vmem:[%s4 + $0x1] sm:$0x1]
            %v423 = vadd.f32 %v420, 1e-05
            %v424 = vrsqrt.pop %v423
            %v425 = vmul.f32 %v424, %v423
            %v426 = vmul.f32 %v425, %v424
            %v427 = vmul.f32 0.5, %v426
            %v428 = vsub.f32 1.5, %v427
            %v429 = vmul.f32 %v424, %v428
            %vm430 = vweird.f32 %v423
            %vm431 = vweird.f32 %v424
            %vm432 = vmor %vm430, %vm431
            %v433 = vsel %vm432, %v424, %v429
            %v434 = vmul.f32 %v421, %v433
            %v435 = vmul.f32 %v416, %v434
            %v436 = vsub.f32 %v422, %v435
            %437 = vst [vmem:[#allocation3] sm:$0x1] %v434
            %438 = vst [vmem:[#allocation3 + $0x1] sm:$0x1] %v436
          $region64: #{tpu_custom_call.1} parent=59 // pred_fallthru
            _
        $region60: #{tpu_custom_call.1} parent=39 // pred_fallthru
          _
        %p439 = scmp.eq.s32.totalorder %s23, 1
        // Predicated region
        $region65: #{tpu_custom_call.1} parent=39 // pred_check
          %p440 = pneg %p439
        $region66: #{tpu_custom_call.1} parent=39 // pred_check_branch
          %442 = sbr.rel (%p440) target = $region68
        $region67: #{tpu_custom_call.1} parent=39 // pred_region
          %v443 = vld [vmem:[%s1] sm:$0x1]
          %445 = vset.pattern.permute.xlu0 0
          %446 = vperm.xlu0 %445, %v272
          %v447 = vpop.permute.xlu0 %446
          %450 = vset.pattern.permute.xlu0 0
          %451 = vperm.xlu0 %450, %v273
          %v452 = vpop.permute.xlu0 %451
          %455 = vset.pattern.permute.xlu0 0
          %456 = vperm.xlu0 %455, %v274
          %v457 = vpop.permute.xlu0 %456
          %460 = vset.pattern.permute.xlu0 0
          %461 = vperm.xlu0 %460, %v275
          %v462 = vpop.permute.xlu0 %461
          %v464 = vperm.slane %v443, 0
          %v465 = vmul.f32 %v447, %v464
          %v466 = vmul.f32 %v452, %v464
          %v467 = vmul.f32 %v457, %v464
          %v468 = vmul.f32 %v462, %v464
          %v469 = vld [vmem:[%s1 + $0x1] sm:$0x1]
          %470 = vset.pattern.permute.xlu0 1
          %471 = vperm.xlu0 %470, %v272
          %v472 = vpop.permute.xlu0 %471
          %474 = vset.pattern.permute.xlu0 1
          %475 = vperm.xlu0 %474, %v273
          %v476 = vpop.permute.xlu0 %475
          %478 = vset.pattern.permute.xlu0 1
          %479 = vperm.xlu0 %478, %v274
          %v480 = vpop.permute.xlu0 %479
          %482 = vset.pattern.permute.xlu0 1
          %483 = vperm.xlu0 %482, %v275
          %v484 = vpop.permute.xlu0 %483
          %v486 = vperm.slane %v469, 0
          %v487 = vmul.f32 %v472, %v486
          %v488 = vmul.f32 %v476, %v486
          %v489 = vmul.f32 %v480, %v486
          %v490 = vmul.f32 %v484, %v486
          %v491 = vadd.f32 %v465, %v487
          %v492 = vadd.f32 %v466, %v488
          %v493 = vadd.f32 %v467, %v489
          %v494 = vadd.f32 %v468, %v490
          %v495 = vld [vmem:[%s1 + $0x2] sm:$0x1]
          %496 = vset.pattern.permute.xlu0 2
          %497 = vperm.xlu0 %496, %v272
          %v498 = vpop.permute.xlu0 %497
          %500 = vset.pattern.permute.xlu0 2
          %501 = vperm.xlu0 %500, %v273
          %v502 = vpop.permute.xlu0 %501
          %504 = vset.pattern.permute.xlu0 2
          %505 = vperm.xlu0 %504, %v274
          %v506 = vpop.permute.xlu0 %505
          %508 = vset.pattern.permute.xlu0 2
          %509 = vperm.xlu0 %508, %v275
          %v510 = vpop.permute.xlu0 %509
          %v512 = vperm.slane %v495, 0
          %v513 = vmul.f32 %v498, %v512
          %v514 = vmul.f32 %v502, %v512
          %v515 = vmul.f32 %v506, %v512
          %v516 = vmul.f32 %v510, %v512
          %v517 = vadd.f32 %v491, %v513
          %v518 = vadd.f32 %v492, %v514
          %v519 = vadd.f32 %v493, %v515
          %v520 = vadd.f32 %v494, %v516
          %v521 = vld [vmem:[%s1 + $0x3] sm:$0x1]
          %522 = vset.pattern.permute.xlu0 3
          %523 = vperm.xlu0 %522, %v272
          %v524 = vpop.permute.xlu0 %523
          %526 = vset.pattern.permute.xlu0 3
          %527 = vperm.xlu0 %526, %v273
          %v528 = vpop.permute.xlu0 %527
          %530 = vset.pattern.permute.xlu0 3
          %531 = vperm.xlu0 %530, %v274
          %v532 = vpop.permute.xlu0 %531
          %534 = vset.pattern.permute.xlu0 3
          %535 = vperm.xlu0 %534, %v275
          %v536 = vpop.permute.xlu0 %535
          %v538 = vperm.slane %v521, 0
          %v539 = vmul.f32 %v524, %v538
          %v540 = vmul.f32 %v528, %v538
          %v541 = vmul.f32 %v532, %v538
          %v542 = vmul.f32 %v536, %v538
          %v543 = vadd.f32 %v517, %v539
          %v544 = vadd.f32 %v518, %v540
          %v545 = vadd.f32 %v519, %v541
          %v546 = vadd.f32 %v520, %v542
          %v547 = vld [vmem:[#allocation3] sm:$0x1]
          %v548 = vld [vmem:[#allocation3 + $0x1] sm:$0x1]
          %v549 = vperm.slane %v547, 0
          %v550 = vmul.f32 %v543, %v549
          %v551 = vmul.f32 %v544, %v549
          %v552 = vmul.f32 %v545, %v549
          %v553 = vmul.f32 %v546, %v549
          %v554 = vperm.slane %v548, 0
          %v555 = vadd.f32 %v550, %v554
          %v556 = vadd.f32 %v551, %v554
          %v557 = vadd.f32 %v552, %v554
          %v558 = vadd.f32 %v553, %v554
          %v559 = vmax.f32 %v555, 0.0
          %v560 = vmax.f32 %v556, 0.0
          %v561 = vmax.f32 %v557, 0.0
          %v562 = vmax.f32 %v558, 0.0
          %v563 = vld [vmem:[#allocation4] sm:$0xff]
          %v564 = vld [vmem:[#allocation4 + $0x8] sm:$0xff]
          %v565 = vld [vmem:[#allocation4 + $0x10] sm:$0xff]
          %v566 = vld [vmem:[#allocation4 + $0x18] sm:$0xff]
          %v567 = vld [vmem:[#allocation4 + $0x20] sm:$0xff]
          %v568 = vld [vmem:[#allocation4 + $0x28] sm:$0xff]
          %v569 = vld [vmem:[#allocation4 + $0x30] sm:$0xff]
          %v570 = vld [vmem:[#allocation4 + $0x38] sm:$0xff]
          %v571 = vld [vmem:[#allocation4 + $0x40] sm:$0xff]
          %v572 = vld [vmem:[#allocation4 + $0x48] sm:$0xff]
          %v573 = vld [vmem:[#allocation4 + $0x50] sm:$0xff]
          %v574 = vld [vmem:[#allocation4 + $0x58] sm:$0xff]
          %v575 = vld [vmem:[#allocation4 + $0x60] sm:$0xff]
          %v576 = vld [vmem:[#allocation4 + $0x68] sm:$0xff]
          %v577 = vld [vmem:[#allocation4 + $0x70] sm:$0xff]
          %v578 = vld [vmem:[#allocation4 + $0x78] sm:$0xff]
          %579 = vmatpush.msra.mxu0 %v578
          %580 = vmatpush.msra.mxu0 %v577
          %581 = vmatpush.msra.mxu0 %v576
          %582 = vmatpush.msra.mxu0 %v575
          %583 = vmatpush.msra.mxu0 %v574
          %584 = vmatpush.msra.mxu0 %v573
          %585 = vmatpush.msra.mxu0 %v572
          %586 = vmatpush.msra.mxu0 %v571
          %587 = vmatpush.msra.mxu0 %v570
          %588 = vmatpush.msra.mxu0 %v569
          %589 = vmatpush.msra.mxu0 %v568
          %590 = vmatpush.msra.mxu0 %v567
          %591 = vmatpush.msra.mxu0 %v566
          %592 = vmatpush.msra.mxu0 %v565
          %593 = vmatpush.msra.mxu0 %v564
          %594 = vmatpush.msra.mxu0 %v563
          %595 = vmatmul.f32.gmra.mxu0 %v559
          %v596 = vpop.f32.mrf.mxu0
          %v597 = vadd.f32 0.0, %v596
          %598 = vmatmul.f32.gmra.mxu0 %v560
          %v599 = vpop.f32.mrf.mxu0
          %v600 = vadd.f32 0.0, %v599
          %601 = vmatmul.f32.gmra.mxu0 %v561
          %v602 = vpop.f32.mrf.mxu0
          %v603 = vadd.f32 0.0, %v602
          %604 = vmatmul.f32.gmra.mxu0 %v562
          %v605 = vpop.f32.mrf.mxu0
          %v606 = vadd.f32 0.0, %v605
          %607 = vdwg.mxu0
          %v608 = vld [vmem:[#allocation2 + $0x2] sm:$0x1]
          %v609 = vadd.f32 %v597, %v600
          %v610 = vadd.f32 %v609, %v603
          %v611 = vadd.f32 %v610, %v606
          %v612 = vrot.slane %v611, 4
          %v613 = vadd.f32 %v611, %v612
          %v614 = vrot.slane %v613, 2
          %v615 = vadd.f32 %v613, %v614
          %v616 = vrot.slane %v615, 1
          %v617 = vadd.f32 %v615, %v616
          %v618 = vadd.f32 %v608, %v617
          %619 = vst [vmem:[#allocation2 + $0x2] sm:$0x1] %v618
          %v620 = vld [vmem:[#allocation2 + $0x3] sm:$0x1]
          %v621 = vmul.f32 %v597, %v597
          %v622 = vmul.f32 %v600, %v600
          %v623 = vmul.f32 %v603, %v603
          %v624 = vmul.f32 %v606, %v606
          %v625 = vadd.f32 %v621, %v622
          %v626 = vadd.f32 %v625, %v623
          %v627 = vadd.f32 %v626, %v624
          %v628 = vrot.slane %v627, 4
          %v629 = vadd.f32 %v627, %v628
          %v630 = vrot.slane %v629, 2
          %v631 = vadd.f32 %v629, %v630
          %v632 = vrot.slane %v631, 1
          %v633 = vadd.f32 %v631, %v632
          %v634 = vadd.f32 %v620, %v633
          %635 = vst [vmem:[#allocation2 + $0x3] sm:$0x1] %v634
          // Predicated region
          $region69: #{tpu_custom_call.1} parent=67 // pred_check
            %p636 = pneg %p260
          $region70: #{tpu_custom_call.1} parent=67 // pred_check_branch
            %638 = sbr.rel (%p636) target = $region72
          $region71: #{tpu_custom_call.1} parent=67 // pred_region
            %v639 = vld [vmem:[#allocation2 + $0x2] sm:$0x1]
            %v640 = vld [vmem:[#allocation2 + $0x3] sm:$0x1]
            %v641 = vmul.f32 %v639, 0.03125
            %v642 = vmul.f32 %v640, 0.03125
            %v643 = vmul.f32 %v641, %v641
            %v644 = vsub.f32 %v642, %v643
            %v645 = vmax.f32 %v644, 0.0
            %v646 = vld [vmem:[%s4 + $0x2] sm:$0x1]
            %v647 = vld [vmem:[%s4 + $0x3] sm:$0x1]
            %v648 = vadd.f32 %v645, 1e-05
            %v649 = vrsqrt.pop %v648
            %v650 = vmul.f32 %v649, %v648
            %v651 = vmul.f32 %v650, %v649
            %v652 = vmul.f32 0.5, %v651
            %v653 = vsub.f32 1.5, %v652
            %v654 = vmul.f32 %v649, %v653
            %vm655 = vweird.f32 %v648
            %vm656 = vweird.f32 %v649
            %vm657 = vmor %vm655, %vm656
            %v658 = vsel %vm657, %v649, %v654
            %v659 = vmul.f32 %v646, %v658
            %v660 = vmul.f32 %v641, %v659
            %v661 = vsub.f32 %v647, %v660
            %662 = vst [vmem:[#allocation3 + $0x2] sm:$0x1] %v659
            %663 = vst [vmem:[#allocation3 + $0x3] sm:$0x1] %v661
          $region72: #{tpu_custom_call.1} parent=67 // pred_fallthru
            _
        $region68: #{tpu_custom_call.1} parent=39 // pred_fallthru
          _
        %p664 = scmp.eq.s32.totalorder %s23, 2
        // Predicated region
        $region73: #{tpu_custom_call.1} parent=39 // pred_check
          %p665 = pneg %p664
        $region74: #{tpu_custom_call.1} parent=39 // pred_check_branch
          %667 = sbr.rel (%p665) target = $region76
        $region75: #{tpu_custom_call.1} parent=39 // pred_region
          %v668 = vld [vmem:[%s1] sm:$0x1]
          %670 = vset.pattern.permute.xlu0 0
          %671 = vperm.xlu0 %670, %v272
          %v672 = vpop.permute.xlu0 %671
          %675 = vset.pattern.permute.xlu0 0
          %676 = vperm.xlu0 %675, %v273
          %v677 = vpop.permute.xlu0 %676
          %680 = vset.pattern.permute.xlu0 0
          %681 = vperm.xlu0 %680, %v274
          %v682 = vpop.permute.xlu0 %681
          %685 = vset.pattern.permute.xlu0 0
          %686 = vperm.xlu0 %685, %v275
          %v687 = vpop.permute.xlu0 %686
          %v689 = vperm.slane %v668, 0
          %v690 = vmul.f32 %v672, %v689
          %v691 = vmul.f32 %v677, %v689
          %v692 = vmul.f32 %v682, %v689
          %v693 = vmul.f32 %v687, %v689
          %v694 = vld [vmem:[%s1 + $0x1] sm:$0x1]
          %695 = vset.pattern.permute.xlu0 1
          %696 = vperm.xlu0 %695, %v272
          %v697 = vpop.permute.xlu0 %696
          %699 = vset.pattern.permute.xlu0 1
          %700 = vperm.xlu0 %699, %v273
          %v701 = vpop.permute.xlu0 %700
          %703 = vset.pattern.permute.xlu0 1
          %704 = vperm.xlu0 %703, %v274
          %v705 = vpop.permute.xlu0 %704
          %707 = vset.pattern.permute.xlu0 1
          %708 = vperm.xlu0 %707, %v275
          %v709 = vpop.permute.xlu0 %708
          %v711 = vperm.slane %v694, 0
          %v712 = vmul.f32 %v697, %v711
          %v713 = vmul.f32 %v701, %v711
          %v714 = vmul.f32 %v705, %v711
          %v715 = vmul.f32 %v709, %v711
          %v716 = vadd.f32 %v690, %v712
          %v717 = vadd.f32 %v691, %v713
          %v718 = vadd.f32 %v692, %v714
          %v719 = vadd.f32 %v693, %v715
          %v720 = vld [vmem:[%s1 + $0x2] sm:$0x1]
          %721 = vset.pattern.permute.xlu0 2
          %722 = vperm.xlu0 %721, %v272
          %v723 = vpop.permute.xlu0 %722
          %725 = vset.pattern.permute.xlu0 2
          %726 = vperm.xlu0 %725, %v273
          %v727 = vpop.permute.xlu0 %726
          %729 = vset.pattern.permute.xlu0 2
          %730 = vperm.xlu0 %729, %v274
          %v731 = vpop.permute.xlu0 %730
          %733 = vset.pattern.permute.xlu0 2
          %734 = vperm.xlu0 %733, %v275
          %v735 = vpop.permute.xlu0 %734
          %v737 = vperm.slane %v720, 0
          %v738 = vmul.f32 %v723, %v737
          %v739 = vmul.f32 %v727, %v737
          %v740 = vmul.f32 %v731, %v737
          %v741 = vmul.f32 %v735, %v737
          %v742 = vadd.f32 %v716, %v738
          %v743 = vadd.f32 %v717, %v739
          %v744 = vadd.f32 %v718, %v740
          %v745 = vadd.f32 %v719, %v741
          %v746 = vld [vmem:[%s1 + $0x3] sm:$0x1]
          %747 = vset.pattern.permute.xlu0 3
          %748 = vperm.xlu0 %747, %v272
          %v749 = vpop.permute.xlu0 %748
          %751 = vset.pattern.permute.xlu0 3
          %752 = vperm.xlu0 %751, %v273
          %v753 = vpop.permute.xlu0 %752
          %755 = vset.pattern.permute.xlu0 3
          %756 = vperm.xlu0 %755, %v274
          %v757 = vpop.permute.xlu0 %756
          %759 = vset.pattern.permute.xlu0 3
          %760 = vperm.xlu0 %759, %v275
          %v761 = vpop.permute.xlu0 %760
          %v763 = vperm.slane %v746, 0
          %v764 = vmul.f32 %v749, %v763
          %v765 = vmul.f32 %v753, %v763
          %v766 = vmul.f32 %v757, %v763
          %v767 = vmul.f32 %v761, %v763
          %v768 = vadd.f32 %v742, %v764
          %v769 = vadd.f32 %v743, %v765
          %v770 = vadd.f32 %v744, %v766
          %v771 = vadd.f32 %v745, %v767
          %v772 = vld [vmem:[#allocation3] sm:$0x1]
          %v773 = vld [vmem:[#allocation3 + $0x1] sm:$0x1]
          %v774 = vperm.slane %v772, 0
          %v775 = vmul.f32 %v768, %v774
          %v776 = vmul.f32 %v769, %v774
          %v777 = vmul.f32 %v770, %v774
          %v778 = vmul.f32 %v771, %v774
          %v779 = vperm.slane %v773, 0
          %v780 = vadd.f32 %v775, %v779
          %v781 = vadd.f32 %v776, %v779
          %v782 = vadd.f32 %v777, %v779
          %v783 = vadd.f32 %v778, %v779
          %v784 = vmax.f32 %v780, 0.0
          %v785 = vmax.f32 %v781, 0.0
          %v786 = vmax.f32 %v782, 0.0
          %v787 = vmax.f32 %v783, 0.0
          %v788 = vld [vmem:[#allocation4] sm:$0xff]
          %v789 = vld [vmem:[#allocation4 + $0x8] sm:$0xff]
          %v790 = vld [vmem:[#allocation4 + $0x10] sm:$0xff]
          %v791 = vld [vmem:[#allocation4 + $0x18] sm:$0xff]
          %v792 = vld [vmem:[#allocation4 + $0x20] sm:$0xff]
          %v793 = vld [vmem:[#allocation4 + $0x28] sm:$0xff]
          %v794 = vld [vmem:[#allocation4 + $0x30] sm:$0xff]
          %v795 = vld [vmem:[#allocation4 + $0x38] sm:$0xff]
          %v796 = vld [vmem:[#allocation4 + $0x40] sm:$0xff]
          %v797 = vld [vmem:[#allocation4 + $0x48] sm:$0xff]
          %v798 = vld [vmem:[#allocation4 + $0x50] sm:$0xff]
          %v799 = vld [vmem:[#allocation4 + $0x58] sm:$0xff]
          %v800 = vld [vmem:[#allocation4 + $0x60] sm:$0xff]
          %v801 = vld [vmem:[#allocation4 + $0x68] sm:$0xff]
          %v802 = vld [vmem:[#allocation4 + $0x70] sm:$0xff]
          %v803 = vld [vmem:[#allocation4 + $0x78] sm:$0xff]
          %804 = vmatpush.msra.mxu0 %v803
          %805 = vmatpush.msra.mxu0 %v802
          %806 = vmatpush.msra.mxu0 %v801
          %807 = vmatpush.msra.mxu0 %v800
          %808 = vmatpush.msra.mxu0 %v799
          %809 = vmatpush.msra.mxu0 %v798
          %810 = vmatpush.msra.mxu0 %v797
          %811 = vmatpush.msra.mxu0 %v796
          %812 = vmatpush.msra.mxu0 %v795
          %813 = vmatpush.msra.mxu0 %v794
          %814 = vmatpush.msra.mxu0 %v793
          %815 = vmatpush.msra.mxu0 %v792
          %816 = vmatpush.msra.mxu0 %v791
          %817 = vmatpush.msra.mxu0 %v790
          %818 = vmatpush.msra.mxu0 %v789
          %819 = vmatpush.msra.mxu0 %v788
          %820 = vmatmul.f32.gmra.mxu0 %v784
          %v821 = vpop.f32.mrf.mxu0
          %v822 = vadd.f32 0.0, %v821
          %823 = vmatmul.f32.gmra.mxu0 %v785
          %v824 = vpop.f32.mrf.mxu0
          %v825 = vadd.f32 0.0, %v824
          %826 = vmatmul.f32.gmra.mxu0 %v786
          %v827 = vpop.f32.mrf.mxu0
          %v828 = vadd.f32 0.0, %v827
          %829 = vmatmul.f32.gmra.mxu0 %v787
          %v830 = vpop.f32.mrf.mxu0
          %v831 = vadd.f32 0.0, %v830
          %832 = vdwg.mxu0
          %v833 = vld [vmem:[#allocation3 + $0x2] sm:$0x1]
          %v834 = vld [vmem:[#allocation3 + $0x3] sm:$0x1]
          %v835 = vperm.slane %v833, 0
          %v836 = vmul.f32 %v822, %v835
          %v837 = vmul.f32 %v825, %v835
          %v838 = vmul.f32 %v828, %v835
          %v839 = vmul.f32 %v831, %v835
          %v840 = vperm.slane %v834, 0
          %v841 = vadd.f32 %v836, %v840
          %v842 = vadd.f32 %v837, %v840
          %v843 = vadd.f32 %v838, %v840
          %v844 = vadd.f32 %v839, %v840
          %v845 = vmax.f32 %v841, 0.0
          %v846 = vmax.f32 %v842, 0.0
          %v847 = vmax.f32 %v843, 0.0
          %v848 = vmax.f32 %v844, 0.0
          %v849 = vld [vmem:[#allocation7] sm:$0xff]
          %v850 = vld [vmem:[#allocation7 + $0x8] sm:$0xff]
          %v851 = vld [vmem:[#allocation7 + $0x10] sm:$0xff]
          %v852 = vld [vmem:[#allocation7 + $0x18] sm:$0xff]
          %v853 = vld [vmem:[#allocation7 + $0x20] sm:$0xff]
          %v854 = vld [vmem:[#allocation7 + $0x28] sm:$0xff]
          %v855 = vld [vmem:[#allocation7 + $0x30] sm:$0xff]
          %v856 = vld [vmem:[#allocation7 + $0x38] sm:$0xff]
          %v857 = vld [vmem:[#allocation7 + $0x40] sm:$0xff]
          %v858 = vld [vmem:[#allocation7 + $0x48] sm:$0xff]
          %v859 = vld [vmem:[#allocation7 + $0x50] sm:$0xff]
          %v860 = vld [vmem:[#allocation7 + $0x58] sm:$0xff]
          %v861 = vld [vmem:[#allocation7 + $0x60] sm:$0xff]
          %v862 = vld [vmem:[#allocation7 + $0x68] sm:$0xff]
          %v863 = vld [vmem:[#allocation7 + $0x70] sm:$0xff]
          %v864 = vld [vmem:[#allocation7 + $0x78] sm:$0xff]
          %865 = vmatpush.msra.mxu0 %v864
          %866 = vmatpush.msra.mxu0 %v863
          %867 = vmatpush.msra.mxu0 %v862
          %868 = vmatpush.msra.mxu0 %v861
          %869 = vmatpush.msra.mxu0 %v860
          %870 = vmatpush.msra.mxu0 %v859
          %871 = vmatpush.msra.mxu0 %v858
          %872 = vmatpush.msra.mxu0 %v857
          %873 = vmatpush.msra.mxu0 %v856
          %874 = vmatpush.msra.mxu0 %v855
          %875 = vmatpush.msra.mxu0 %v854
          %876 = vmatpush.msra.mxu0 %v853
          %877 = vmatpush.msra.mxu0 %v852
          %878 = vmatpush.msra.mxu0 %v851
          %879 = vmatpush.msra.mxu0 %v850
          %880 = vmatpush.msra.mxu0 %v849
          %881 = vmatmul.f32.gmra.mxu0 %v845
          %v882 = vpop.f32.mrf.mxu0
          %v883 = vadd.f32 0.0, %v882
          %884 = vmatmul.f32.gmra.mxu0 %v846
          %v885 = vpop.f32.mrf.mxu0
          %v886 = vadd.f32 0.0, %v885
          %887 = vmatmul.f32.gmra.mxu0 %v847
          %v888 = vpop.f32.mrf.mxu0
          %v889 = vadd.f32 0.0, %v888
          %890 = vmatmul.f32.gmra.mxu0 %v848
          %v891 = vpop.f32.mrf.mxu0
          %v892 = vadd.f32 0.0, %v891
          %893 = vdwg.mxu0
          %v894 = vld [vmem:[#allocation2 + $0x4] sm:$0x1]
          %v895 = vadd.f32 %v883, %v886
          %v896 = vadd.f32 %v895, %v889
          %v897 = vadd.f32 %v896, %v892
          %v898 = vrot.slane %v897, 4
          %v899 = vadd.f32 %v897, %v898
          %v900 = vrot.slane %v899, 2
          %v901 = vadd.f32 %v899, %v900
          %v902 = vrot.slane %v901, 1
          %v903 = vadd.f32 %v901, %v902
          %v904 = vadd.f32 %v894, %v903
          %905 = vst [vmem:[#allocation2 + $0x4] sm:$0x1] %v904
          %v906 = vld [vmem:[#allocation2 + $0x5] sm:$0x1]
          %v907 = vmul.f32 %v883, %v883
          %v908 = vmul.f32 %v886, %v886
          %v909 = vmul.f32 %v889, %v889
          %v910 = vmul.f32 %v892, %v892
          %v911 = vadd.f32 %v907, %v908
          %v912 = vadd.f32 %v911, %v909
          %v913 = vadd.f32 %v912, %v910
          %v914 = vrot.slane %v913, 4
          %v915 = vadd.f32 %v913, %v914
          %v916 = vrot.slane %v915, 2
          %v917 = vadd.f32 %v915, %v916
          %v918 = vrot.slane %v917, 1
          %v919 = vadd.f32 %v917, %v918
          %v920 = vadd.f32 %v906, %v919
          %921 = vst [vmem:[#allocation2 + $0x5] sm:$0x1] %v920
          // Predicated region
          $region77: #{tpu_custom_call.1} parent=75 // pred_check
            %p922 = pneg %p260
          $region78: #{tpu_custom_call.1} parent=75 // pred_check_branch
            %924 = sbr.rel (%p922) target = $region80
          $region79: #{tpu_custom_call.1} parent=75 // pred_region
            %v925 = vld [vmem:[#allocation2 + $0x4] sm:$0x1]
            %v926 = vld [vmem:[#allocation2 + $0x5] sm:$0x1]
            %v927 = vmul.f32 %v925, 0.03125
            %v928 = vmul.f32 %v926, 0.03125
            %v929 = vmul.f32 %v927, %v927
            %v930 = vsub.f32 %v928, %v929
            %v931 = vmax.f32 %v930, 0.0
            %v932 = vld [vmem:[%s4 + $0x4] sm:$0x1]
            %v933 = vld [vmem:[%s4 + $0x5] sm:$0x1]
            %v934 = vadd.f32 %v931, 1e-05
            %v935 = vrsqrt.pop %v934
            %v936 = vmul.f32 %v935, %v934
            %v937 = vmul.f32 %v936, %v935
            %v938 = vmul.f32 0.5, %v937
            %v939 = vsub.f32 1.5, %v938
            %v940 = vmul.f32 %v935, %v939
            %vm941 = vweird.f32 %v934
            %vm942 = vweird.f32 %v935
            %vm943 = vmor %vm941, %vm942
            %v944 = vsel %vm943, %v935, %v940
            %v945 = vmul.f32 %v932, %v944
            %v946 = vmul.f32 %v927, %v945
            %v947 = vsub.f32 %v933, %v946
            %948 = vst [vmem:[#allocation3 + $0x4] sm:$0x1] %v945
            %949 = vst [vmem:[#allocation3 + $0x5] sm:$0x1] %v947
          $region80: #{tpu_custom_call.1} parent=75 // pred_fallthru
            _
        $region76: #{tpu_custom_call.1} parent=39 // pred_fallthru
          _
        // Predicated region
        $region81: #{tpu_custom_call.1} parent=39 // pred_check
          %p950 = pneg %p266
        $region82: #{tpu_custom_call.1} parent=39 // pred_check_branch
          %952 = sbr.rel (%p950) target = $region84
        $region83: #{tpu_custom_call.1} parent=39 // pred_region
          %v953 = vld [vmem:[%s1] sm:$0x1]
          %955 = vset.pattern.permute.xlu0 0
          %956 = vperm.xlu0 %955, %v272
          %v957 = vpop.permute.xlu0 %956
          %960 = vset.pattern.permute.xlu0 0
          %961 = vperm.xlu0 %960, %v273
          %v962 = vpop.permute.xlu0 %961
          %965 = vset.pattern.permute.xlu0 0
          %966 = vperm.xlu0 %965, %v274
          %v967 = vpop.permute.xlu0 %966
          %970 = vset.pattern.permute.xlu0 0
          %971 = vperm.xlu0 %970, %v275
          %v972 = vpop.permute.xlu0 %971
          %v974 = vperm.slane %v953, 0
          %v975 = vmul.f32 %v957, %v974
          %v976 = vmul.f32 %v962, %v974
          %v977 = vmul.f32 %v967, %v974
          %v978 = vmul.f32 %v972, %v974
          %v979 = vld [vmem:[%s1 + $0x1] sm:$0x1]
          %980 = vset.pattern.permute.xlu0 1
          %981 = vperm.xlu0 %980, %v272
          %v982 = vpop.permute.xlu0 %981
          %984 = vset.pattern.permute.xlu0 1
          %985 = vperm.xlu0 %984, %v273
          %v986 = vpop.permute.xlu0 %985
          %988 = vset.pattern.permute.xlu0 1
          %989 = vperm.xlu0 %988, %v274
          %v990 = vpop.permute.xlu0 %989
          %992 = vset.pattern.permute.xlu0 1
          %993 = vperm.xlu0 %992, %v275
          %v994 = vpop.permute.xlu0 %993
          %v996 = vperm.slane %v979, 0
          %v997 = vmul.f32 %v982, %v996
          %v998 = vmul.f32 %v986, %v996
          %v999 = vmul.f32 %v990, %v996
          %v1000 = vmul.f32 %v994, %v996
          %v1001 = vadd.f32 %v975, %v997
          %v1002 = vadd.f32 %v976, %v998
          %v1003 = vadd.f32 %v977, %v999
          %v1004 = vadd.f32 %v978, %v1000
          %v1005 = vld [vmem:[%s1 + $0x2] sm:$0x1]
          %1006 = vset.pattern.permute.xlu0 2
          %1007 = vperm.xlu0 %1006, %v272
          %v1008 = vpop.permute.xlu0 %1007
          %1010 = vset.pattern.permute.xlu0 2
          %1011 = vperm.xlu0 %1010, %v273
          %v1012 = vpop.permute.xlu0 %1011
          %1014 = vset.pattern.permute.xlu0 2
          %1015 = vperm.xlu0 %1014, %v274
          %v1016 = vpop.permute.xlu0 %1015
          %1018 = vset.pattern.permute.xlu0 2
          %1019 = vperm.xlu0 %1018, %v275
          %v1020 = vpop.permute.xlu0 %1019
          %v1022 = vperm.slane %v1005, 0
          %v1023 = vmul.f32 %v1008, %v1022
          %v1024 = vmul.f32 %v1012, %v1022
          %v1025 = vmul.f32 %v1016, %v1022
          %v1026 = vmul.f32 %v1020, %v1022
          %v1027 = vadd.f32 %v1001, %v1023
          %v1028 = vadd.f32 %v1002, %v1024
          %v1029 = vadd.f32 %v1003, %v1025
          %v1030 = vadd.f32 %v1004, %v1026
          %v1031 = vld [vmem:[%s1 + $0x3] sm:$0x1]
          %1032 = vset.pattern.permute.xlu0 3
          %1033 = vperm.xlu0 %1032, %v272
          %v1034 = vpop.permute.xlu0 %1033
          %1036 = vset.pattern.permute.xlu0 3
          %1037 = vperm.xlu0 %1036, %v273
          %v1038 = vpop.permute.xlu0 %1037
          %1040 = vset.pattern.permute.xlu0 3
          %1041 = vperm.xlu0 %1040, %v274
          %v1042 = vpop.permute.xlu0 %1041
          %1044 = vset.pattern.permute.xlu0 3
          %1045 = vperm.xlu0 %1044, %v275
          %v1046 = vpop.permute.xlu0 %1045
          %v1048 = vperm.slane %v1031, 0
          %v1049 = vmul.f32 %v1034, %v1048
          %v1050 = vmul.f32 %v1038, %v1048
          %v1051 = vmul.f32 %v1042, %v1048
          %v1052 = vmul.f32 %v1046, %v1048
          %v1053 = vadd.f32 %v1027, %v1049
          %v1054 = vadd.f32 %v1028, %v1050
          %v1055 = vadd.f32 %v1029, %v1051
          %v1056 = vadd.f32 %v1030, %v1052
          %v1057 = vld [vmem:[#allocation3] sm:$0x1]
          %v1058 = vld [vmem:[#allocation3 + $0x1] sm:$0x1]
          %v1059 = vperm.slane %v1057, 0
          %v1060 = vmul.f32 %v1053, %v1059
          %v1061 = vmul.f32 %v1054, %v1059
          %v1062 = vmul.f32 %v1055, %v1059
          %v1063 = vmul.f32 %v1056, %v1059
          %v1064 = vperm.slane %v1058, 0
          %v1065 = vadd.f32 %v1060, %v1064
          %v1066 = vadd.f32 %v1061, %v1064
          %v1067 = vadd.f32 %v1062, %v1064
          %v1068 = vadd.f32 %v1063, %v1064
          %v1069 = vmax.f32 %v1065, 0.0
          %v1070 = vmax.f32 %v1066, 0.0
          %v1071 = vmax.f32 %v1067, 0.0
          %v1072 = vmax.f32 %v1068, 0.0
          %v1073 = vld [vmem:[#allocation4] sm:$0xff]
          %v1074 = vld [vmem:[#allocation4 + $0x8] sm:$0xff]
          %v1075 = vld [vmem:[#allocation4 + $0x10] sm:$0xff]
          %v1076 = vld [vmem:[#allocation4 + $0x18] sm:$0xff]
          %v1077 = vld [vmem:[#allocation4 + $0x20] sm:$0xff]
          %v1078 = vld [vmem:[#allocation4 + $0x28] sm:$0xff]
          %v1079 = vld [vmem:[#allocation4 + $0x30] sm:$0xff]
          %v1080 = vld [vmem:[#allocation4 + $0x38] sm:$0xff]
          %v1081 = vld [vmem:[#allocation4 + $0x40] sm:$0xff]
          %v1082 = vld [vmem:[#allocation4 + $0x48] sm:$0xff]
          %v1083 = vld [vmem:[#allocation4 + $0x50] sm:$0xff]
          %v1084 = vld [vmem:[#allocation4 + $0x58] sm:$0xff]
          %v1085 = vld [vmem:[#allocation4 + $0x60] sm:$0xff]
          %v1086 = vld [vmem:[#allocation4 + $0x68] sm:$0xff]
          %v1087 = vld [vmem:[#allocation4 + $0x70] sm:$0xff]
          %v1088 = vld [vmem:[#allocation4 + $0x78] sm:$0xff]
          %1089 = vmatpush.msra.mxu0 %v1088
          %1090 = vmatpush.msra.mxu0 %v1087
          %1091 = vmatpush.msra.mxu0 %v1086
          %1092 = vmatpush.msra.mxu0 %v1085
          %1093 = vmatpush.msra.mxu0 %v1084
          %1094 = vmatpush.msra.mxu0 %v1083
          %1095 = vmatpush.msra.mxu0 %v1082
          %1096 = vmatpush.msra.mxu0 %v1081
          %1097 = vmatpush.msra.mxu0 %v1080
          %1098 = vmatpush.msra.mxu0 %v1079
          %1099 = vmatpush.msra.mxu0 %v1078
          %1100 = vmatpush.msra.mxu0 %v1077
          %1101 = vmatpush.msra.mxu0 %v1076
          %1102 = vmatpush.msra.mxu0 %v1075
          %1103 = vmatpush.msra.mxu0 %v1074
          %1104 = vmatpush.msra.mxu0 %v1073
          %1105 = vmatmul.f32.gmra.mxu0 %v1069
          %v1106 = vpop.f32.mrf.mxu0
          %v1107 = vadd.f32 0.0, %v1106
          %1108 = vmatmul.f32.gmra.mxu0 %v1070
          %v1109 = vpop.f32.mrf.mxu0
          %v1110 = vadd.f32 0.0, %v1109
          %1111 = vmatmul.f32.gmra.mxu0 %v1071
          %v1112 = vpop.f32.mrf.mxu0
          %v1113 = vadd.f32 0.0, %v1112
          %1114 = vmatmul.f32.gmra.mxu0 %v1072
          %v1115 = vpop.f32.mrf.mxu0
          %v1116 = vadd.f32 0.0, %v1115
          %1117 = vdwg.mxu0
          %v1118 = vld [vmem:[#allocation3 + $0x2] sm:$0x1]
          %v1119 = vld [vmem:[#allocation3 + $0x3] sm:$0x1]
          %v1120 = vperm.slane %v1118, 0
          %v1121 = vmul.f32 %v1107, %v1120
          %v1122 = vmul.f32 %v1110, %v1120
          %v1123 = vmul.f32 %v1113, %v1120
          %v1124 = vmul.f32 %v1116, %v1120
          %v1125 = vperm.slane %v1119, 0
          %v1126 = vadd.f32 %v1121, %v1125
          %v1127 = vadd.f32 %v1122, %v1125
          %v1128 = vadd.f32 %v1123, %v1125
          %v1129 = vadd.f32 %v1124, %v1125
          %v1130 = vmax.f32 %v1126, 0.0
          %v1131 = vmax.f32 %v1127, 0.0
          %v1132 = vmax.f32 %v1128, 0.0
          %v1133 = vmax.f32 %v1129, 0.0
          %v1134 = vld [vmem:[#allocation7] sm:$0xff]
          %v1135 = vld [vmem:[#allocation7 + $0x8] sm:$0xff]
          %v1136 = vld [vmem:[#allocation7 + $0x10] sm:$0xff]
          %v1137 = vld [vmem:[#allocation7 + $0x18] sm:$0xff]
          %v1138 = vld [vmem:[#allocation7 + $0x20] sm:$0xff]
          %v1139 = vld [vmem:[#allocation7 + $0x28] sm:$0xff]
          %v1140 = vld [vmem:[#allocation7 + $0x30] sm:$0xff]
          %v1141 = vld [vmem:[#allocation7 + $0x38] sm:$0xff]
          %v1142 = vld [vmem:[#allocation7 + $0x40] sm:$0xff]
          %v1143 = vld [vmem:[#allocation7 + $0x48] sm:$0xff]
          %v1144 = vld [vmem:[#allocation7 + $0x50] sm:$0xff]
          %v1145 = vld [vmem:[#allocation7 + $0x58] sm:$0xff]
          %v1146 = vld [vmem:[#allocation7 + $0x60] sm:$0xff]
          %v1147 = vld [vmem:[#allocation7 + $0x68] sm:$0xff]
          %v1148 = vld [vmem:[#allocation7 + $0x70] sm:$0xff]
          %v1149 = vld [vmem:[#allocation7 + $0x78] sm:$0xff]
          %1150 = vmatpush.msra.mxu0 %v1149
          %1151 = vmatpush.msra.mxu0 %v1148
          %1152 = vmatpush.msra.mxu0 %v1147
          %1153 = vmatpush.msra.mxu0 %v1146
          %1154 = vmatpush.msra.mxu0 %v1145
          %1155 = vmatpush.msra.mxu0 %v1144
          %1156 = vmatpush.msra.mxu0 %v1143
          %1157 = vmatpush.msra.mxu0 %v1142
          %1158 = vmatpush.msra.mxu0 %v1141
          %1159 = vmatpush.msra.mxu0 %v1140
          %1160 = vmatpush.msra.mxu0 %v1139
          %1161 = vmatpush.msra.mxu0 %v1138
          %1162 = vmatpush.msra.mxu0 %v1137
          %1163 = vmatpush.msra.mxu0 %v1136
          %1164 = vmatpush.msra.mxu0 %v1135
          %1165 = vmatpush.msra.mxu0 %v1134
          %1166 = vmatmul.f32.gmra.mxu0 %v1130
          %v1167 = vpop.f32.mrf.mxu0
          %v1168 = vadd.f32 0.0, %v1167
          %1169 = vmatmul.f32.gmra.mxu0 %v1131
          %v1170 = vpop.f32.mrf.mxu0
          %v1171 = vadd.f32 0.0, %v1170
          %1172 = vmatmul.f32.gmra.mxu0 %v1132
          %v1173 = vpop.f32.mrf.mxu0
          %v1174 = vadd.f32 0.0, %v1173
          %1175 = vmatmul.f32.gmra.mxu0 %v1133
          %v1176 = vpop.f32.mrf.mxu0
          %v1177 = vadd.f32 0.0, %v1176
          %1178 = vdwg.mxu0
          %v1179 = vld [vmem:[#allocation3 + $0x4] sm:$0x1]
          %v1180 = vld [vmem:[#allocation3 + $0x5] sm:$0x1]
          %v1181 = vperm.slane %v1179, 0
          %v1182 = vmul.f32 %v1168, %v1181
          %v1183 = vmul.f32 %v1171, %v1181
          %v1184 = vmul.f32 %v1174, %v1181
          %v1185 = vmul.f32 %v1177, %v1181
          %v1186 = vperm.slane %v1180, 0
          %v1187 = vadd.f32 %v1182, %v1186
          %v1188 = vadd.f32 %v1183, %v1186
          %v1189 = vadd.f32 %v1184, %v1186
          %v1190 = vadd.f32 %v1185, %v1186
          %v1191 = vmax.f32 %v1187, 0.0
          %v1192 = vmax.f32 %v1188, 0.0
          %v1193 = vmax.f32 %v1189, 0.0
          %v1194 = vmax.f32 %v1190, 0.0
          %v1195 = vmax.f32 %v1191, %v1192
          %v1196 = vrot.slane %v1195, 4
          %v1197 = vmax.f32 %v1195, %v1196
          %v1198 = vrot.slane %v1197, 2
          %v1199 = vmax.f32 %v1197, %v1198
          %v1200 = vrot.slane %v1199, 1
          %v1201 = vmax.f32 %v1199, %v1200
          %v1202 = vmax.f32 %v1193, %v1194
          %v1203 = vrot.slane %v1202, 4
          %v1204 = vmax.f32 %v1202, %v1203
          %v1205 = vrot.slane %v1204, 2
          %v1206 = vmax.f32 %v1204, %v1205
          %v1207 = vrot.slane %v1206, 1
          %v1208 = vmax.f32 %v1206, %v1207
          %v1209 = vld [vmem:[#allocation9] sm:$0x3]
          %vm1212 = vcmask 1041409
          %v1213 = vsel %vm1212, %v1208, %v1201
          %v1215 = vmax.f32 %v1209, %v1213
          %1216 = vst [vmem:[#allocation9] sm:$0x3] %v1215
        $region84: #{tpu_custom_call.1} parent=39 // pred_fallthru
          _
        // Predicated region
        $region85: #{tpu_custom_call.1} parent=39 // pred_check
          %p1217 = pneg %p154
        $region86: #{tpu_custom_call.1} parent=39 // pred_check_branch
          %1219 = sbr.rel (%p1217) target = $region88
        $region87: #{tpu_custom_call.1} parent=39 // pred_region
          %1221 = vsyncadd [#allocation6], 0
          %s1223 = sshll.u32 [#allocation9], 4
          %s1224 = int_to_ptr.vmem [resolvable:$true] %s1223
          %s1225 = sshll.u32 %s5, 4
          %s1226 = int_to_ptr.hbm [resolvable:$true] %s1225
          %1228 = dma.vmem_to_hbm [thread:$0]  %s1224, 32, %s1226, [#allocation6]
        $region88: #{tpu_custom_call.1} parent=39 // pred_fallthru
          _
        // Predicated region
        $region89: #{tpu_custom_call.1} parent=39 // pred_check
          %p1229 = pneg %p154
        $region90: #{tpu_custom_call.1} parent=39 // pred_check_branch
          %1231 = sbr.rel (%p1229) target = $region92
        $region91: #{tpu_custom_call.1} parent=39 // pred_region
          %1233 = dma.done [#allocation6], 32
        $region92: #{tpu_custom_call.1} parent=39 // pred_fallthru
          _
      $region40: #{tpu_custom_call.1} parent=5 // pred_fallthru
        _
      %p1234 = scmp.le.s32.totalorder 2, %s14
      // Predicated region
      $region93: #{tpu_custom_call.1} parent=5 // pred_check
        %p1235 = pneg %p1234
      $region94: #{tpu_custom_call.1} parent=5 // pred_check_branch
        %1237 = sbr.rel (%p1235) target = $region96
      $region95: #{tpu_custom_call.1} parent=5 // pred_region
        %s1238 = ssub.s32 %s14, 2
      $region96: #{tpu_custom_call.1} parent=5 // pred_fallthru
        _
    $region6: #{tpu_custom_call.1} parent=1 // loop_footer
      %s18 = sadd.s32 1, %s14
    $region7: #{tpu_custom_call.1} parent=1 // loop_footer_branch
      %13 = sbr.rel target = $region3
    $region8: #{tpu_custom_call.1} parent=1 // loop_exit
      _
    %1239 = vsyncpa [#allocation5], 1
    %s1240 = scalar_lea.sflag [#allocation5], 1
    %1241 = vsyncpa %s1240, 1
    %1242 = vsyncpa [#allocation8], 1
    %1243 = vsyncpa [#allocation6], 1
    %s1244 = scalar_lea.sflag [#allocation6], 1
    %1245 = vsyncpa %s1244, 1

</llo_original>
